<compile_context>
chip_gen: v7x
topology: tpu7x:2x2x1
jax: 0.10.0
libtpu: 0.0.40
codegen_flags: <defaults>
</compile_context>

<pallas_src>
import math
import jax
import jax.numpy as jnp
from jax import lax
from jax.experimental import pallas as pl
from jax.experimental.pallas import tpu as pltpu

# ---------------- small synthetic config ----------------
B = 2             # batch
S = 8             # seq_len
D = 32            # dim
H = 4             # num_heads
HD = D // H       # head_dim = 8
MLP_SCALE = 4
INTER = MLP_SCALE * D   # 128
ROPE_THETA = 10000.0
LN_EPS = 1e-5
ATTN_SCALE = 1.0 / math.sqrt(HD)
GELU_C = math.sqrt(2.0 / math.pi)


# ---------------- fused Pallas kernel ----------------
def fused_layer_kernel(x_ref, ln1g_ref, ln1b_ref, wqkv_ref, bqkv_ref,
                       wo_ref, bo_ref, ln2g_ref, ln2b_ref,
                       w1_ref, b1_ref, w3_ref, b3_ref, w2_ref, b2_ref,
                       cos_ref, sin_ref, rot_ref, o_ref):
    # One grid step == one batch element. All tensors live in VMEM.
    x = x_ref[0]                                     # (S, D) fp32

    def layernorm(t, g, b):
        mean = jnp.mean(t, axis=-1, keepdims=True)
        tc = t - mean
        var = jnp.mean(tc * tc, axis=-1, keepdims=True)   # biased var (PyTorch LN)
        return tc * lax.rsqrt(var + LN_EPS) * g + b

    # ---- attention block: x = x + c_proj(attn(attn_norm(x))) ----
    xn = layernorm(x, ln1g_ref[...], ln1b_ref[...])

    # fused QKV projection: one MXU op instead of three
    qkv = jnp.dot(xn, wqkv_ref[...], preferred_element_type=jnp.float32) + bqkv_ref[...]
    q = qkv[:, :D]
    k = qkv[:, D:2 * D]
    v = qkv[:, 2 * D:]

    # RoPE on the packed-head (S, H*HD) slab. `rot` is block-diagonal so that
    # (x @ rot) == rotate_half(x) within each head ([-x2, x1]).
    cos = cos_ref[...]
    sin = sin_ref[...]
    rot = rot_ref[...]
    q = q * cos + jnp.dot(q, rot, preferred_element_type=jnp.float32) * sin
    k = k * cos + jnp.dot(k, rot, preferred_element_type=jnp.float32) * sin
    q = q * ATTN_SCALE     # fold 1/sqrt(HD) into q before the bf16 cast

    row = lax.broadcasted_iota(jnp.int32, (S, S), 0)
    col = lax.broadcasted_iota(jnp.int32, (S, S), 1)
    causal = col <= row

    # causal attention, all heads in this one program (statically unrolled over H)
    outs = []
    for h in range(H):
        lo, hi = h * HD, (h + 1) * HD
        qh = q[:, lo:hi].astype(jnp.bfloat16)
        kh = k[:, lo:hi].astype(jnp.bfloat16)
        vh = v[:, lo:hi].astype(jnp.bfloat16)
        s = lax.dot_general(qh, kh, (((1,), (1,)), ((), ())),
                            preferred_element_type=jnp.float32)       # (S, S) fp32
        s = jnp.where(causal, s, -jnp.inf)
        m = jnp.max(s, axis=-1, keepdims=True)
        p = jnp.exp(s - m)
        l = jnp.sum(p, axis=-1, keepdims=True)
        oh = jnp.dot(p.astype(jnp.bfloat16), vh,
                     preferred_element_type=jnp.float32)               # (S, HD) fp32
        # normalize after PV matmul; reciprocal goes to the EUP slot
        outs.append(oh * pl.reciprocal(l, approx=True))
    y = jnp.concatenate(outs, axis=-1)                                 # (S, D)

    # c_proj + residual (bias=False -> zero bias passed in)
    x1 = x + jnp.dot(y, wo_ref[...], preferred_element_type=jnp.float32) + bo_ref[...]

    # ---- MLP block: x = x + w2(gelu_tanh(w1(xn2)) * w3(xn2)) ----
    xn2 = layernorm(x1, ln2g_ref[...], ln2b_ref[...])
    h1 = jnp.dot(xn2, w1_ref[...], preferred_element_type=jnp.float32) + b1_ref[...]
    g = 0.5 * h1 * (1.0 + jnp.tanh(GELU_C * (h1 + 0.044715 * h1 * h1 * h1)))
    h3 = jnp.dot(xn2, w3_ref[...], preferred_element_type=jnp.float32) + b3_ref[...]
    mlp_out = jnp.dot(g * h3, w2_ref[...], preferred_element_type=jnp.float32) + b2_ref[...]

    o_ref[0] = x1 + mlp_out


# ---------------- wrapper ----------------
def attention_layer_forward(x, p):
    x_spec = pl.BlockSpec((1, S, D), lambda b: (b, 0, 0))

    def rep(shape):
        return pl.BlockSpec(shape, lambda b, _s=shape: (0,) * len(_s))

    in_specs = [
        x_spec,
        rep((1, D)), rep((1, D)),              # ln1 gamma/beta
        rep((D, 3 * D)), rep((1, 3 * D)),      # fused wqkv / bqkv
        rep((D, D)), rep((1, D)),              # wo / bo (c_proj)
        rep((1, D)), rep((1, D)),              # ln2 gamma/beta
        rep((D, INTER)), rep((1, INTER)),      # w1 / b1
        rep((D, INTER)), rep((1, INTER)),      # w3 / b3
        rep((INTER, D)), rep((1, D)),          # w2 / b2
        rep((S, D)), rep((S, D)),              # RoPE cos / sin (packed heads)
        rep((D, D)),                           # block-diag rotate-half matrix
    ]

    return pl.pallas_call(
        fused_layer_kernel,
        out_shape=jax.ShapeDtypeStruct((B, S, D), jnp.float32),
        grid=(B,),
        in_specs=in_specs,
        out_specs=x_spec,
        compiler_params=pltpu.CompilerParams(dimension_semantics=("parallel",)),
        # TODO(synk): at realistic sizes (S>=1024, D>=1024) add row/K tiling with
        # fp32 VMEM accumulators and size tiles against v7x's 64 MiB VMEM.
    )(x, p["ln1_g"], p["ln1_b"], p["wqkv"], p["bqkv"], p["wo"], p["bo"],
      p["ln2_g"], p["ln2_b"], p["w1"], p["b1"], p["w3"], p["b3"],
      p["w2"], p["b2"], p["cos"], p["sin"], p["rot"])


# ---------------- parameter / table construction ----------------
def make_params(key):
    ks = jax.random.split(key, 12)
    scale = 0.02
    wq = scale * jax.random.normal(ks[0], (D, D), jnp.float32)
    bq = scale * jax.random.normal(ks[1], (1, D), jnp.float32)
    wk = scale * jax.random.normal(ks[2], (D, D), jnp.float32)
    bk = scale * jax.random.normal(ks[3], (1, D), jnp.float32)
    wv = scale * jax.random.normal(ks[4], (D, D), jnp.float32)
    bv = scale * jax.random.normal(ks[5], (1, D), jnp.float32)

    p = {
        "ln1_g": jnp.ones((1, D), jnp.float32),
        "ln1_b": jnp.zeros((1, D), jnp.float32),
        "ln2_g": jnp.ones((1, D), jnp.float32),
        "ln2_b": jnp.zeros((1, D), jnp.float32),
        "wqkv": jnp.concatenate([wq, wk, wv], axis=1),      # (D, 3D)
        "bqkv": jnp.concatenate([bq, bk, bv], axis=1),      # (1, 3D)
        "wo": scale * jax.random.normal(ks[6], (D, D), jnp.float32),
        "bo": jnp.zeros((1, D), jnp.float32),               # c_proj bias=False
        "w1": scale * jax.random.normal(ks[7], (D, INTER), jnp.float32),
        "b1": scale * jax.random.normal(ks[8], (1, INTER), jnp.float32),
        "w3": scale * jax.random.normal(ks[9], (D, INTER), jnp.float32),
        "b3": scale * jax.random.normal(ks[10], (1, INTER), jnp.float32),
        "w2": scale * jax.random.normal(ks[11], (INTER, D), jnp.float32),
        "b2": jnp.zeros((1, D), jnp.float32),
    }

    # RoPE tables (rotate-half convention), precomputed for seq_len S,
    # tiled across heads so they apply directly to the packed (S, H*HD) slab.
    pos = jnp.arange(S, dtype=jnp.float32)[:, None]
    inv_freq = 1.0 / (ROPE_THETA ** (jnp.arange(0, HD, 2, dtype=jnp.float32) / HD))
    ang = pos * inv_freq[None, :]                                       # (S, HD/2)
    cos_head = jnp.concatenate([jnp.cos(ang), jnp.cos(ang)], axis=-1)   # (S, HD)
    sin_head = jnp.concatenate([jnp.sin(ang), jnp.sin(ang)], axis=-1)   # (S, HD)
    p["cos"] = jnp.tile(cos_head, (1, H))                               # (S, D)
    p["sin"] = jnp.tile(sin_head, (1, H))                               # (S, D)

    # per-head rotate-half as a matmul: (x @ rot_head)[i] = -x[i+HD/2] for i < HD/2,
    # x[i-HD/2] otherwise; block-diagonal over heads for the packed layout.
    half = HD // 2
    rot_head = jnp.zeros((HD, HD), jnp.float32)
    rot_head = rot_head.at[jnp.arange(half) + half, jnp.arange(half)].set(-1.0)
    rot_head = rot_head.at[jnp.arange(half), jnp.arange(half) + half].set(1.0)
    p["rot"] = jnp.kron(jnp.eye(H, dtype=jnp.float32), rot_head)        # (D, D)
    return p


if __name__ == "__main__":
    key = jax.random.PRNGKey(0)
    pkey, xkey = jax.random.split(key)
    params = make_params(pkey)
    x = jax.random.normal(xkey, (B, S, D), jnp.float32)

    fwd = jax.jit(attention_layer_forward)
    out = fwd(x, params)
    jax.block_until_ready(out)
    assert out.shape == (B, S, D) and out.dtype == jnp.float32
    assert bool(jnp.all(jnp.isfinite(out)))
    print("KERNEL_OK")
</pallas_src>

<mosaic_0001>
module attributes {stable_mosaic.version = 11 : i64} {
  func.func @fused_layer_kernel(%arg0: i32, %arg1: memref<1x8x32xf32, #tpu.memory_space<vmem>>, %arg2: memref<1x32xf32, #tpu.memory_space<vmem>>, %arg3: memref<1x32xf32, #tpu.memory_space<vmem>>, %arg4: memref<32x96xf32, #tpu.memory_space<vmem>>, %arg5: memref<1x96xf32, #tpu.memory_space<vmem>>, %arg6: memref<32x32xf32, #tpu.memory_space<vmem>>, %arg7: memref<1x32xf32, #tpu.memory_space<vmem>>, %arg8: memref<1x32xf32, #tpu.memory_space<vmem>>, %arg9: memref<1x32xf32, #tpu.memory_space<vmem>>, %arg10: memref<32x128xf32, #tpu.memory_space<vmem>>, %arg11: memref<1x128xf32, #tpu.memory_space<vmem>>, %arg12: memref<32x128xf32, #tpu.memory_space<vmem>>, %arg13: memref<1x128xf32, #tpu.memory_space<vmem>>, %arg14: memref<128x32xf32, #tpu.memory_space<vmem>>, %arg15: memref<1x32xf32, #tpu.memory_space<vmem>>, %arg16: memref<8x32xf32, #tpu.memory_space<vmem>>, %arg17: memref<8x32xf32, #tpu.memory_space<vmem>>, %arg18: memref<32x32xf32, #tpu.memory_space<vmem>>, %arg19: memref<1x8x32xf32, #tpu.memory_space<vmem>>) attributes {dimension_semantics = [#tpu.dimension_semantics<parallel>], iteration_bounds = array<i64: 2>, scalar_prefetch = 0 : i64, scratch_operands = 0 : i64, tpu.core_type = #tpu.core_type<tc>, window_params = [{transform_indices = @transform_0, window_bounds = array<i64: 1, 8, 32>}, {pipeline_mode = #tpu.pipeline_mode<synchronous>, transform_indices = @transform_1, window_bounds = array<i64: 1, 32>}, {pipeline_mode = #tpu.pipeline_mode<synchronous>, transform_indices = @transform_2, window_bounds = array<i64: 1, 32>}, {pipeline_mode = #tpu.pipeline_mode<synchronous>, transform_indices = @transform_3, window_bounds = array<i64: 32, 96>}, {pipeline_mode = #tpu.pipeline_mode<synchronous>, transform_indices = @transform_4, window_bounds = array<i64: 1, 96>}, {pipeline_mode = #tpu.pipeline_mode<synchronous>, transform_indices = @transform_5, window_bounds = array<i64: 32, 32>}, {pipeline_mode = #tpu.pipeline_mode<synchronous>, transform_indices = @transform_6, window_bounds = array<i64: 1, 32>}, {pipeline_mode = #tpu.pipeline_mode<synchronous>, transform_indices = @transform_7, window_bounds = array<i64: 1, 32>}, {pipeline_mode = #tpu.pipeline_mode<synchronous>, transform_indices = @transform_8, window_bounds = array<i64: 1, 32>}, {pipeline_mode = #tpu.pipeline_mode<synchronous>, transform_indices = @transform_9, window_bounds = array<i64: 32, 128>}, {pipeline_mode = #tpu.pipeline_mode<synchronous>, transform_indices = @transform_10, window_bounds = array<i64: 1, 128>}, {pipeline_mode = #tpu.pipeline_mode<synchronous>, transform_indices = @transform_11, window_bounds = array<i64: 32, 128>}, {pipeline_mode = #tpu.pipeline_mode<synchronous>, transform_indices = @transform_12, window_bounds = array<i64: 1, 128>}, {pipeline_mode = #tpu.pipeline_mode<synchronous>, transform_indices = @transform_13, window_bounds = array<i64: 128, 32>}, {pipeline_mode = #tpu.pipeline_mode<synchronous>, transform_indices = @transform_14, window_bounds = array<i64: 1, 32>}, {pipeline_mode = #tpu.pipeline_mode<synchronous>, transform_indices = @transform_15, window_bounds = array<i64: 8, 32>}, {pipeline_mode = #tpu.pipeline_mode<synchronous>, transform_indices = @transform_16, window_bounds = array<i64: 8, 32>}, {pipeline_mode = #tpu.pipeline_mode<synchronous>, transform_indices = @transform_17, window_bounds = array<i64: 32, 32>}, {transform_indices = @transform_18, window_bounds = array<i64: 1, 8, 32>}]} {
    %c0 = arith.constant 0 : index
    %c0_0 = arith.constant 0 : index
    %c0_1 = arith.constant 0 : index
    %0 = vector.load %arg1[%c0, %c0_0, %c0_1] : memref<1x8x32xf32, #tpu.memory_space<vmem>>, vector<1x8x32xf32>
    %1 = vector.shape_cast %0 : vector<1x8x32xf32> to vector<8x32xf32>
    %c0_2 = arith.constant 0 : index
    %c0_3 = arith.constant 0 : index
    %2 = vector.load %arg2[%c0_2, %c0_3] : memref<1x32xf32, #tpu.memory_space<vmem>>, vector<1x32xf32>
    %c0_4 = arith.constant 0 : index
    %c0_5 = arith.constant 0 : index
    %3 = vector.load %arg3[%c0_4, %c0_5] : memref<1x32xf32, #tpu.memory_space<vmem>>, vector<1x32xf32>
    %cst = arith.constant dense<0.000000e+00> : vector<8xf32>
    %4 = vector.multi_reduction <add>, %1, %cst [1] : vector<8x32xf32> to vector<8xf32>
    %5 = vector.shape_cast %4 : vector<8xf32> to vector<8x1xf32>
    %cst_6 = arith.constant 3.200000e+01 : f32
    %6 = vector.broadcast %cst_6 : f32 to vector<8x1xf32>
    %7 = arith.divf %5, %6 : vector<8x1xf32>
    %8 = vector.broadcast %7 : vector<8x1xf32> to vector<8x32xf32>
    %9 = arith.subf %1, %8 : vector<8x32xf32>
    %10 = arith.mulf %9, %9 : vector<8x32xf32>
    %cst_7 = arith.constant dense<0.000000e+00> : vector<8xf32>
    %11 = vector.multi_reduction <add>, %10, %cst_7 [1] : vector<8x32xf32> to vector<8xf32>
    %12 = vector.shape_cast %11 : vector<8xf32> to vector<8x1xf32>
    %cst_8 = arith.constant 3.200000e+01 : f32
    %13 = vector.broadcast %cst_8 : f32 to vector<8x1xf32>
    %14 = arith.divf %12, %13 : vector<8x1xf32>
    %cst_9 = arith.constant 9.99999974E-6 : f32
    %15 = vector.broadcast %cst_9 : f32 to vector<8x1xf32>
    %16 = arith.addf %14, %15 : vector<8x1xf32>
    %17 = math.rsqrt %16 : vector<8x1xf32>
    %18 = vector.broadcast %17 : vector<8x1xf32> to vector<8x32xf32>
    %19 = arith.mulf %9, %18 : vector<8x32xf32>
    %20 = vector.broadcast %2 : vector<1x32xf32> to vector<8x32xf32>
    %21 = arith.mulf %19, %20 : vector<8x32xf32>
    %22 = vector.broadcast %3 : vector<1x32xf32> to vector<8x32xf32>
    %23 = arith.addf %21, %22 : vector<8x32xf32>
    %c0_10 = arith.constant 0 : index
    %c0_11 = arith.constant 0 : index
    %24 = vector.load %arg4[%c0_10, %c0_11] : memref<32x96xf32, #tpu.memory_space<vmem>>, vector<32x96xf32>
    %cst_12 = arith.constant dense<0.000000e+00> : vector<8x96xf32>
    %25 = tpu.matmul %23, %24, %cst_12 {dimension_numbers = #tpu.dot_dimension_numbers<[1], [0], [0], [1], [0, 0, 1, 1], [], []>} : vector<8x32xf32>, vector<32x96xf32>, vector<8x96xf32> -> vector<8x96xf32>
    %c0_13 = arith.constant 0 : index
    %c0_14 = arith.constant 0 : index
    %26 = vector.load %arg5[%c0_13, %c0_14] : memref<1x96xf32, #tpu.memory_space<vmem>>, vector<1x96xf32>
    %27 = vector.broadcast %26 : vector<1x96xf32> to vector<8x96xf32>
    %28 = arith.addf %25, %27 : vector<8x96xf32>
    %29 = vector.extract_strided_slice %28 {offsets = [0, 0], sizes = [8, 32], strides = [1, 1]} : vector<8x96xf32> to vector<8x32xf32>
    %30 = vector.extract_strided_slice %28 {offsets = [0, 32], sizes = [8, 32], strides = [1, 1]} : vector<8x96xf32> to vector<8x32xf32>
    %31 = vector.extract_strided_slice %28 {offsets = [0, 64], sizes = [8, 32], strides = [1, 1]} : vector<8x96xf32> to vector<8x32xf32>
    %c0_15 = arith.constant 0 : index
    %c0_16 = arith.constant 0 : index
    %32 = vector.load %arg16[%c0_15, %c0_16] : memref<8x32xf32, #tpu.memory_space<vmem>>, vector<8x32xf32>
    %c0_17 = arith.constant 0 : index
    %c0_18 = arith.constant 0 : index
    %33 = vector.load %arg17[%c0_17, %c0_18] : memref<8x32xf32, #tpu.memory_space<vmem>>, vector<8x32xf32>
    %c0_19 = arith.constant 0 : index
    %c0_20 = arith.constant 0 : index
    %34 = vector.load %arg18[%c0_19, %c0_20] : memref<32x32xf32, #tpu.memory_space<vmem>>, vector<32x32xf32>
    %35 = arith.mulf %29, %32 : vector<8x32xf32>
    %cst_21 = arith.constant dense<0.000000e+00> : vector<8x32xf32>
    %36 = tpu.matmul %29, %34, %cst_21 {dimension_numbers = #tpu.dot_dimension_numbers<[1], [0], [0], [1], [0, 0, 1, 1], [], []>} : vector<8x32xf32>, vector<32x32xf32>, vector<8x32xf32> -> vector<8x32xf32>
    %37 = arith.mulf %36, %33 : vector<8x32xf32>
    %38 = arith.addf %35, %37 : vector<8x32xf32>
    %39 = arith.mulf %30, %32 : vector<8x32xf32>
    %cst_22 = arith.constant dense<0.000000e+00> : vector<8x32xf32>
    %40 = tpu.matmul %30, %34, %cst_22 {dimension_numbers = #tpu.dot_dimension_numbers<[1], [0], [0], [1], [0, 0, 1, 1], [], []>} : vector<8x32xf32>, vector<32x32xf32>, vector<8x32xf32> -> vector<8x32xf32>
    %41 = arith.mulf %40, %33 : vector<8x32xf32>
    %42 = arith.addf %39, %41 : vector<8x32xf32>
    %cst_23 = arith.constant 0.353553385 : f32
    %43 = vector.broadcast %cst_23 : f32 to vector<8x32xf32>
    %44 = arith.mulf %38, %43 : vector<8x32xf32>
    %45 = tpu.iota {dimensions = array<i32: 0>} : vector<8x8xi32>
    %46 = tpu.iota {dimensions = array<i32: 1>} : vector<8x8xi32>
    %47 = arith.cmpi sle, %46, %45 : vector<8x8xi32>
    %48 = vector.extract_strided_slice %44 {offsets = [0, 0], sizes = [8, 8], strides = [1, 1]} : vector<8x32xf32> to vector<8x8xf32>
    %49 = arith.truncf %48 : vector<8x8xf32> to vector<8x8xbf16>
    %50 = vector.extract_strided_slice %42 {offsets = [0, 0], sizes = [8, 8], strides = [1, 1]} : vector<8x32xf32> to vector<8x8xf32>
    %51 = arith.truncf %50 : vector<8x8xf32> to vector<8x8xbf16>
    %52 = vector.extract_strided_slice %31 {offsets = [0, 0], sizes = [8, 8], strides = [1, 1]} : vector<8x32xf32> to vector<8x8xf32>
    %53 = arith.truncf %52 : vector<8x8xf32> to vector<8x8xbf16>
    %cst_24 = arith.constant dense<0.000000e+00> : vector<8x8xf32>
    %54 = tpu.matmul %49, %51, %cst_24 {dimension_numbers = #tpu.dot_dimension_numbers<[1], [1], [0], [0], [0, 0, 1, 0], [], []>} : vector<8x8xbf16>, vector<8x8xbf16>, vector<8x8xf32> -> vector<8x8xf32>
    %cst_25 = arith.constant 0xFF800000 : f32
    %55 = vector.broadcast %cst_25 : f32 to vector<8x8xf32>
    %56 = arith.select %47, %54, %55 : vector<8x8xi1>, vector<8x8xf32>
    %cst_26 = arith.constant dense<0xFF800000> : vector<8xf32>
    %57 = vector.multi_reduction <maximumf>, %56, %cst_26 [1] : vector<8x8xf32> to vector<8xf32>
    %58 = vector.shape_cast %57 : vector<8xf32> to vector<8x1xf32>
    %59 = vector.broadcast %58 : vector<8x1xf32> to vector<8x8xf32>
    %60 = arith.subf %56, %59 : vector<8x8xf32>
    %61 = math.exp %60 : vector<8x8xf32>
    %cst_27 = arith.constant dense<0.000000e+00> : vector<8xf32>
    %62 = vector.multi_reduction <add>, %61, %cst_27 [1] : vector<8x8xf32> to vector<8xf32>
    %63 = vector.shape_cast %62 : vector<8xf32> to vector<8x1xf32>
    %64 = arith.truncf %61 : vector<8x8xf32> to vector<8x8xbf16>
    %cst_28 = arith.constant dense<0.000000e+00> : vector<8x8xf32>
    %65 = tpu.matmul %64, %53, %cst_28 {dimension_numbers = #tpu.dot_dimension_numbers<[1], [0], [0], [1], [0, 0, 1, 1], [], []>} : vector<8x8xbf16>, vector<8x8xbf16>, vector<8x8xf32> -> vector<8x8xf32>
    %66 = tpu.reciprocal %63 {approx = true} : vector<8x1xf32> -> vector<8x1xf32>
    %67 = vector.broadcast %66 : vector<8x1xf32> to vector<8x8xf32>
    %68 = arith.mulf %65, %67 : vector<8x8xf32>
    %69 = vector.extract_strided_slice %44 {offsets = [0, 8], sizes = [8, 8], strides = [1, 1]} : vector<8x32xf32> to vector<8x8xf32>
    %70 = arith.truncf %69 : vector<8x8xf32> to vector<8x8xbf16>
    %71 = vector.extract_strided_slice %42 {offsets = [0, 8], sizes = [8, 8], strides = [1, 1]} : vector<8x32xf32> to vector<8x8xf32>
    %72 = arith.truncf %71 : vector<8x8xf32> to vector<8x8xbf16>
    %73 = vector.extract_strided_slice %31 {offsets = [0, 8], sizes = [8, 8], strides = [1, 1]} : vector<8x32xf32> to vector<8x8xf32>
    %74 = arith.truncf %73 : vector<8x8xf32> to vector<8x8xbf16>
    %cst_29 = arith.constant dense<0.000000e+00> : vector<8x8xf32>
    %75 = tpu.matmul %70, %72, %cst_29 {dimension_numbers = #tpu.dot_dimension_numbers<[1], [1], [0], [0], [0, 0, 1, 0], [], []>} : vector<8x8xbf16>, vector<8x8xbf16>, vector<8x8xf32> -> vector<8x8xf32>
    %cst_30 = arith.constant 0xFF800000 : f32
    %76 = vector.broadcast %cst_30 : f32 to vector<8x8xf32>
    %77 = arith.select %47, %75, %76 : vector<8x8xi1>, vector<8x8xf32>
    %cst_31 = arith.constant dense<0xFF800000> : vector<8xf32>
    %78 = vector.multi_reduction <maximumf>, %77, %cst_31 [1] : vector<8x8xf32> to vector<8xf32>
    %79 = vector.shape_cast %78 : vector<8xf32> to vector<8x1xf32>
    %80 = vector.broadcast %79 : vector<8x1xf32> to vector<8x8xf32>
    %81 = arith.subf %77, %80 : vector<8x8xf32>
    %82 = math.exp %81 : vector<8x8xf32>
    %cst_32 = arith.constant dense<0.000000e+00> : vector<8xf32>
    %83 = vector.multi_reduction <add>, %82, %cst_32 [1] : vector<8x8xf32> to vector<8xf32>
    %84 = vector.shape_cast %83 : vector<8xf32> to vector<8x1xf32>
    %85 = arith.truncf %82 : vector<8x8xf32> to vector<8x8xbf16>
    %cst_33 = arith.constant dense<0.000000e+00> : vector<8x8xf32>
    %86 = tpu.matmul %85, %74, %cst_33 {dimension_numbers = #tpu.dot_dimension_numbers<[1], [0], [0], [1], [0, 0, 1, 1], [], []>} : vector<8x8xbf16>, vector<8x8xbf16>, vector<8x8xf32> -> vector<8x8xf32>
    %87 = tpu.reciprocal %84 {approx = true} : vector<8x1xf32> -> vector<8x1xf32>
    %88 = vector.broadcast %87 : vector<8x1xf32> to vector<8x8xf32>
    %89 = arith.mulf %86, %88 : vector<8x8xf32>
    %90 = vector.extract_strided_slice %44 {offsets = [0, 16], sizes = [8, 8], strides = [1, 1]} : vector<8x32xf32> to vector<8x8xf32>
    %91 = arith.truncf %90 : vector<8x8xf32> to vector<8x8xbf16>
    %92 = vector.extract_strided_slice %42 {offsets = [0, 16], sizes = [8, 8], strides = [1, 1]} : vector<8x32xf32> to vector<8x8xf32>
    %93 = arith.truncf %92 : vector<8x8xf32> to vector<8x8xbf16>
    %94 = vector.extract_strided_slice %31 {offsets = [0, 16], sizes = [8, 8], strides = [1, 1]} : vector<8x32xf32> to vector<8x8xf32>
    %95 = arith.truncf %94 : vector<8x8xf32> to vector<8x8xbf16>
    %cst_34 = arith.constant dense<0.000000e+00> : vector<8x8xf32>
    %96 = tpu.matmul %91, %93, %cst_34 {dimension_numbers = #tpu.dot_dimension_numbers<[1], [1], [0], [0], [0, 0, 1, 0], [], []>} : vector<8x8xbf16>, vector<8x8xbf16>, vector<8x8xf32> -> vector<8x8xf32>
    %cst_35 = arith.constant 0xFF800000 : f32
    %97 = vector.broadcast %cst_35 : f32 to vector<8x8xf32>
    %98 = arith.select %47, %96, %97 : vector<8x8xi1>, vector<8x8xf32>
    %cst_36 = arith.constant dense<0xFF800000> : vector<8xf32>
    %99 = vector.multi_reduction <maximumf>, %98, %cst_36 [1] : vector<8x8xf32> to vector<8xf32>
    %100 = vector.shape_cast %99 : vector<8xf32> to vector<8x1xf32>
    %101 = vector.broadcast %100 : vector<8x1xf32> to vector<8x8xf32>
    %102 = arith.subf %98, %101 : vector<8x8xf32>
    %103 = math.exp %102 : vector<8x8xf32>
    %cst_37 = arith.constant dense<0.000000e+00> : vector<8xf32>
    %104 = vector.multi_reduction <add>, %103, %cst_37 [1] : vector<8x8xf32> to vector<8xf32>
    %105 = vector.shape_cast %104 : vector<8xf32> to vector<8x1xf32>
    %106 = arith.truncf %103 : vector<8x8xf32> to vector<8x8xbf16>
    %cst_38 = arith.constant dense<0.000000e+00> : vector<8x8xf32>
    %107 = tpu.matmul %106, %95, %cst_38 {dimension_numbers = #tpu.dot_dimension_numbers<[1], [0], [0], [1], [0, 0, 1, 1], [], []>} : vector<8x8xbf16>, vector<8x8xbf16>, vector<8x8xf32> -> vector<8x8xf32>
    %108 = tpu.reciprocal %105 {approx = true} : vector<8x1xf32> -> vector<8x1xf32>
    %109 = vector.broadcast %108 : vector<8x1xf32> to vector<8x8xf32>
    %110 = arith.mulf %107, %109 : vector<8x8xf32>
    %111 = vector.extract_strided_slice %44 {offsets = [0, 24], sizes = [8, 8], strides = [1, 1]} : vector<8x32xf32> to vector<8x8xf32>
    %112 = arith.truncf %111 : vector<8x8xf32> to vector<8x8xbf16>
    %113 = vector.extract_strided_slice %42 {offsets = [0, 24], sizes = [8, 8], strides = [1, 1]} : vector<8x32xf32> to vector<8x8xf32>
    %114 = arith.truncf %113 : vector<8x8xf32> to vector<8x8xbf16>
    %115 = vector.extract_strided_slice %31 {offsets = [0, 24], sizes = [8, 8], strides = [1, 1]} : vector<8x32xf32> to vector<8x8xf32>
    %116 = arith.truncf %115 : vector<8x8xf32> to vector<8x8xbf16>
    %cst_39 = arith.constant dense<0.000000e+00> : vector<8x8xf32>
    %117 = tpu.matmul %112, %114, %cst_39 {dimension_numbers = #tpu.dot_dimension_numbers<[1], [1], [0], [0], [0, 0, 1, 0], [], []>} : vector<8x8xbf16>, vector<8x8xbf16>, vector<8x8xf32> -> vector<8x8xf32>
    %cst_40 = arith.constant 0xFF800000 : f32
    %118 = vector.broadcast %cst_40 : f32 to vector<8x8xf32>
    %119 = arith.select %47, %117, %118 : vector<8x8xi1>, vector<8x8xf32>
    %cst_41 = arith.constant dense<0xFF800000> : vector<8xf32>
    %120 = vector.multi_reduction <maximumf>, %119, %cst_41 [1] : vector<8x8xf32> to vector<8xf32>
    %121 = vector.shape_cast %120 : vector<8xf32> to vector<8x1xf32>
    %122 = vector.broadcast %121 : vector<8x1xf32> to vector<8x8xf32>
    %123 = arith.subf %119, %122 : vector<8x8xf32>
    %124 = math.exp %123 : vector<8x8xf32>
    %cst_42 = arith.constant dense<0.000000e+00> : vector<8xf32>
    %125 = vector.multi_reduction <add>, %124, %cst_42 [1] : vector<8x8xf32> to vector<8xf32>
    %126 = vector.shape_cast %125 : vector<8xf32> to vector<8x1xf32>
    %127 = arith.truncf %124 : vector<8x8xf32> to vector<8x8xbf16>
    %cst_43 = arith.constant dense<0.000000e+00> : vector<8x8xf32>
    %128 = tpu.matmul %127, %116, %cst_43 {dimension_numbers = #tpu.dot_dimension_numbers<[1], [0], [0], [1], [0, 0, 1, 1], [], []>} : vector<8x8xbf16>, vector<8x8xbf16>, vector<8x8xf32> -> vector<8x8xf32>
    %129 = tpu.reciprocal %126 {approx = true} : vector<8x1xf32> -> vector<8x1xf32>
    %130 = vector.broadcast %129 : vector<8x1xf32> to vector<8x8xf32>
    %131 = arith.mulf %128, %130 : vector<8x8xf32>
    %132 = tpu.concatenate %68, %89, %110, %131 in 1 : vector<8x8xf32>, vector<8x8xf32>, vector<8x8xf32>, vector<8x8xf32> -> vector<8x32xf32>
    %c0_44 = arith.constant 0 : index
    %c0_45 = arith.constant 0 : index
    %133 = vector.load %arg6[%c0_44, %c0_45] : memref<32x32xf32, #tpu.memory_space<vmem>>, vector<32x32xf32>
    %cst_46 = arith.constant dense<0.000000e+00> : vector<8x32xf32>
    %134 = tpu.matmul %132, %133, %cst_46 {dimension_numbers = #tpu.dot_dimension_numbers<[1], [0], [0], [1], [0, 0, 1, 1], [], []>} : vector<8x32xf32>, vector<32x32xf32>, vector<8x32xf32> -> vector<8x32xf32>
    %135 = arith.addf %1, %134 : vector<8x32xf32>
    %c0_47 = arith.constant 0 : index
    %c0_48 = arith.constant 0 : index
    %136 = vector.load %arg7[%c0_47, %c0_48] : memref<1x32xf32, #tpu.memory_space<vmem>>, vector<1x32xf32>
    %137 = vector.broadcast %136 : vector<1x32xf32> to vector<8x32xf32>
    %138 = arith.addf %135, %137 : vector<8x32xf32>
    %c0_49 = arith.constant 0 : index
    %c0_50 = arith.constant 0 : index
    %139 = vector.load %arg8[%c0_49, %c0_50] : memref<1x32xf32, #tpu.memory_space<vmem>>, vector<1x32xf32>
    %c0_51 = arith.constant 0 : index
    %c0_52 = arith.constant 0 : index
    %140 = vector.load %arg9[%c0_51, %c0_52] : memref<1x32xf32, #tpu.memory_space<vmem>>, vector<1x32xf32>
    %cst_53 = arith.constant dense<0.000000e+00> : vector<8xf32>
    %141 = vector.multi_reduction <add>, %138, %cst_53 [1] : vector<8x32xf32> to vector<8xf32>
    %142 = vector.shape_cast %141 : vector<8xf32> to vector<8x1xf32>
    %cst_54 = arith.constant 3.200000e+01 : f32
    %143 = vector.broadcast %cst_54 : f32 to vector<8x1xf32>
    %144 = arith.divf %142, %143 : vector<8x1xf32>
    %145 = vector.broadcast %144 : vector<8x1xf32> to vector<8x32xf32>
    %146 = arith.subf %138, %145 : vector<8x32xf32>
    %147 = arith.mulf %146, %146 : vector<8x32xf32>
    %cst_55 = arith.constant dense<0.000000e+00> : vector<8xf32>
    %148 = vector.multi_reduction <add>, %147, %cst_55 [1] : vector<8x32xf32> to vector<8xf32>
    %149 = vector.shape_cast %148 : vector<8xf32> to vector<8x1xf32>
    %cst_56 = arith.constant 3.200000e+01 : f32
    %150 = vector.broadcast %cst_56 : f32 to vector<8x1xf32>
    %151 = arith.divf %149, %150 : vector<8x1xf32>
    %cst_57 = arith.constant 9.99999974E-6 : f32
    %152 = vector.broadcast %cst_57 : f32 to vector<8x1xf32>
    %153 = arith.addf %151, %152 : vector<8x1xf32>
    %154 = math.rsqrt %153 : vector<8x1xf32>
    %155 = vector.broadcast %154 : vector<8x1xf32> to vector<8x32xf32>
    %156 = arith.mulf %146, %155 : vector<8x32xf32>
    %157 = vector.broadcast %139 : vector<1x32xf32> to vector<8x32xf32>
    %158 = arith.mulf %156, %157 : vector<8x32xf32>
    %159 = vector.broadcast %140 : vector<1x32xf32> to vector<8x32xf32>
    %160 = arith.addf %158, %159 : vector<8x32xf32>
    %c0_58 = arith.constant 0 : index
    %c0_59 = arith.constant 0 : index
    %161 = vector.load %arg10[%c0_58, %c0_59] : memref<32x128xf32, #tpu.memory_space<vmem>>, vector<32x128xf32>
    %cst_60 = arith.constant dense<0.000000e+00> : vector<8x128xf32>
    %162 = tpu.matmul %160, %161, %cst_60 {dimension_numbers = #tpu.dot_dimension_numbers<[1], [0], [0], [1], [0, 0, 1, 1], [], []>} : vector<8x32xf32>, vector<32x128xf32>, vector<8x128xf32> -> vector<8x128xf32>
    %c0_61 = arith.constant 0 : index
    %c0_62 = arith.constant 0 : index
    %163 = vector.load %arg11[%c0_61, %c0_62] : memref<1x128xf32, #tpu.memory_space<vmem>>, vector<1x128xf32>
    %164 = vector.broadcast %163 : vector<1x128xf32> to vector<8x128xf32>
    %165 = arith.addf %162, %164 : vector<8x128xf32>
    %cst_63 = arith.constant 5.000000e-01 : f32
    %166 = vector.broadcast %cst_63 : f32 to vector<8x128xf32>
    %167 = arith.mulf %166, %165 : vector<8x128xf32>
    %cst_64 = arith.constant 4.471500e-02 : f32
    %168 = vector.broadcast %cst_64 : f32 to vector<8x128xf32>
    %169 = arith.mulf %168, %165 : vector<8x128xf32>
    %170 = arith.mulf %169, %165 : vector<8x128xf32>
    %171 = arith.mulf %170, %165 : vector<8x128xf32>
    %172 = arith.addf %165, %171 : vector<8x128xf32>
    %cst_65 = arith.constant 0.797884583 : f32
    %173 = vector.broadcast %cst_65 : f32 to vector<8x128xf32>
    %174 = arith.mulf %173, %172 : vector<8x128xf32>
    %175 = math.tanh %174 : vector<8x128xf32>
    %cst_66 = arith.constant 1.000000e+00 : f32
    %176 = vector.broadcast %cst_66 : f32 to vector<8x128xf32>
    %177 = arith.addf %176, %175 : vector<8x128xf32>
    %178 = arith.mulf %167, %177 : vector<8x128xf32>
    %c0_67 = arith.constant 0 : index
    %c0_68 = arith.constant 0 : index
    %179 = vector.load %arg12[%c0_67, %c0_68] : memref<32x128xf32, #tpu.memory_space<vmem>>, vector<32x128xf32>
    %cst_69 = arith.constant dense<0.000000e+00> : vector<8x128xf32>
    %180 = tpu.matmul %160, %179, %cst_69 {dimension_numbers = #tpu.dot_dimension_numbers<[1], [0], [0], [1], [0, 0, 1, 1], [], []>} : vector<8x32xf32>, vector<32x128xf32>, vector<8x128xf32> -> vector<8x128xf32>
    %c0_70 = arith.constant 0 : index
    %c0_71 = arith.constant 0 : index
    %181 = vector.load %arg13[%c0_70, %c0_71] : memref<1x128xf32, #tpu.memory_space<vmem>>, vector<1x128xf32>
    %182 = vector.broadcast %181 : vector<1x128xf32> to vector<8x128xf32>
    %183 = arith.addf %180, %182 : vector<8x128xf32>
    %184 = arith.mulf %178, %183 : vector<8x128xf32>
    %c0_72 = arith.constant 0 : index
    %c0_73 = arith.constant 0 : index
    %185 = vector.load %arg14[%c0_72, %c0_73] : memref<128x32xf32, #tpu.memory_space<vmem>>, vector<128x32xf32>
    %cst_74 = arith.constant dense<0.000000e+00> : vector<8x32xf32>
    %186 = tpu.matmul %184, %185, %cst_74 {dimension_numbers = #tpu.dot_dimension_numbers<[1], [0], [0], [1], [0, 0, 1, 1], [], []>} : vector<8x128xf32>, vector<128x32xf32>, vector<8x32xf32> -> vector<8x32xf32>
    %c0_75 = arith.constant 0 : index
    %c0_76 = arith.constant 0 : index
    %187 = vector.load %arg15[%c0_75, %c0_76] : memref<1x32xf32, #tpu.memory_space<vmem>>, vector<1x32xf32>
    %188 = vector.broadcast %187 : vector<1x32xf32> to vector<8x32xf32>
    %189 = arith.addf %186, %188 : vector<8x32xf32>
    %190 = arith.addf %138, %189 : vector<8x32xf32>
    %c0_77 = arith.constant 0 : index
    %c0_78 = arith.constant 0 : index
    %c0_79 = arith.constant 0 : index
    %191 = vector.load %arg19[%c0_77, %c0_78, %c0_79] : memref<1x8x32xf32, #tpu.memory_space<vmem>>, vector<1x8x32xf32>
    %192 = vector.shape_cast %191 : vector<1x8x32xf32> to vector<8x32xf32>
    %193 = vector.shape_cast %190 : vector<8x32xf32> to vector<1x8x32xf32>
    tpu.vector_store %arg19[%c0_77, %c0_78, %c0_79], %193 {strides = array<i32>} : memref<1x8x32xf32, #tpu.memory_space<vmem>>, vector<1x8x32xf32>,
    return
  }
  func.func @transform_0(%arg0: i32) -> (i32, i32, i32) {
    %c0_i32 = arith.constant 0 : i32
    %c0_i32_0 = arith.constant 0 : i32
    %c0_i32_1 = arith.constant 0 : i32
    return %arg0, %c0_i32, %c0_i32_0 : i32, i32, i32
  }
  func.func @transform_1(%arg0: i32) -> (i32, i32) {
    %c0_i32 = arith.constant 0 : i32
    %c0_i32_0 = arith.constant 0 : i32
    %c0_i32_1 = arith.constant 0 : i32
    return %c0_i32, %c0_i32_0 : i32, i32
  }
  func.func @transform_2(%arg0: i32) -> (i32, i32) {
    %c0_i32 = arith.constant 0 : i32
    %c0_i32_0 = arith.constant 0 : i32
    %c0_i32_1 = arith.constant 0 : i32
    return %c0_i32, %c0_i32_0 : i32, i32
  }
  func.func @transform_3(%arg0: i32) -> (i32, i32) {
    %c0_i32 = arith.constant 0 : i32
    %c0_i32_0 = arith.constant 0 : i32
    %c0_i32_1 = arith.constant 0 : i32
    return %c0_i32, %c0_i32_0 : i32, i32
  }
  func.func @transform_4(%arg0: i32) -> (i32, i32) {
    %c0_i32 = arith.constant 0 : i32
    %c0_i32_0 = arith.constant 0 : i32
    %c0_i32_1 = arith.constant 0 : i32
    return %c0_i32, %c0_i32_0 : i32, i32
  }
  func.func @transform_5(%arg0: i32) -> (i32, i32) {
    %c0_i32 = arith.constant 0 : i32
    %c0_i32_0 = arith.constant 0 : i32
    %c0_i32_1 = arith.constant 0 : i32
    return %c0_i32, %c0_i32_0 : i32, i32
  }
  func.func @transform_6(%arg0: i32) -> (i32, i32) {
    %c0_i32 = arith.constant 0 : i32
    %c0_i32_0 = arith.constant 0 : i32
    %c0_i32_1 = arith.constant 0 : i32
    return %c0_i32, %c0_i32_0 : i32, i32
  }
  func.func @transform_7(%arg0: i32) -> (i32, i32) {
    %c0_i32 = arith.constant 0 : i32
    %c0_i32_0 = arith.constant 0 : i32
    %c0_i32_1 = arith.constant 0 : i32
    return %c0_i32, %c0_i32_0 : i32, i32
  }
  func.func @transform_8(%arg0: i32) -> (i32, i32) {
    %c0_i32 = arith.constant 0 : i32
    %c0_i32_0 = arith.constant 0 : i32
    %c0_i32_1 = arith.constant 0 : i32
    return %c0_i32, %c0_i32_0 : i32, i32
  }
  func.func @transform_9(%arg0: i32) -> (i32, i32) {
    %c0_i32 = arith.constant 0 : i32
    %c0_i32_0 = arith.constant 0 : i32
    %c0_i32_1 = arith.constant 0 : i32
    return %c0_i32, %c0_i32_0 : i32, i32
  }
  func.func @transform_10(%arg0: i32) -> (i32, i32) {
    %c0_i32 = arith.constant 0 : i32
    %c0_i32_0 = arith.constant 0 : i32
    %c0_i32_1 = arith.constant 0 : i32
    return %c0_i32, %c0_i32_0 : i32, i32
  }
  func.func @transform_11(%arg0: i32) -> (i32, i32) {
    %c0_i32 = arith.constant 0 : i32
    %c0_i32_0 = arith.constant 0 : i32
    %c0_i32_1 = arith.constant 0 : i32
    return %c0_i32, %c0_i32_0 : i32, i32
  }
  func.func @transform_12(%arg0: i32) -> (i32, i32) {
    %c0_i32 = arith.constant 0 : i32
    %c0_i32_0 = arith.constant 0 : i32
    %c0_i32_1 = arith.constant 0 : i32
    return %c0_i32, %c0_i32_0 : i32, i32
  }
  func.func @transform_13(%arg0: i32) -> (i32, i32) {
    %c0_i32 = arith.constant 0 : i32
    %c0_i32_0 = arith.constant 0 : i32
    %c0_i32_1 = arith.constant 0 : i32
    return %c0_i32, %c0_i32_0 : i32, i32
  }
  func.func @transform_14(%arg0: i32) -> (i32, i32) {
    %c0_i32 = arith.constant 0 : i32
    %c0_i32_0 = arith.constant 0 : i32
    %c0_i32_1 = arith.constant 0 : i32
    return %c0_i32, %c0_i32_0 : i32, i32
  }
  func.func @transform_15(%arg0: i32) -> (i32, i32) {
    %c0_i32 = arith.constant 0 : i32
    %c0_i32_0 = arith.constant 0 : i32
    %c0_i32_1 = arith.constant 0 : i32
    return %c0_i32, %c0_i32_0 : i32, i32
  }
  func.func @transform_16(%arg0: i32) -> (i32, i32) {
    %c0_i32 = arith.constant 0 : i32
    %c0_i32_0 = arith.constant 0 : i32
    %c0_i32_1 = arith.constant 0 : i32
    return %c0_i32, %c0_i32_0 : i32, i32
  }
  func.func @transform_17(%arg0: i32) -> (i32, i32) {
    %c0_i32 = arith.constant 0 : i32
    %c0_i32_0 = arith.constant 0 : i32
    %c0_i32_1 = arith.constant 0 : i32
    return %c0_i32, %c0_i32_0 : i32, i32
  }
  func.func @transform_18(%arg0: i32) -> (i32, i32, i32) {
    %c0_i32 = arith.constant 0 : i32
    %c0_i32_0 = arith.constant 0 : i32
    %c0_i32_1 = arith.constant 0 : i32
    return %arg0, %c0_i32, %c0_i32_0 : i32, i32, i32
  }
}

</mosaic_0001>

<llo_original>
// kernel: attention_layer_forward.1
$region0: #{attention_layer_forward.1}
  #allocation0 [shape = 'u32[]', space=smem, size = 0x4, offset = 0x4, fixed_abs, tag = 'smem constant byte address 0x4 - core index']
  #allocation1 [shape = 'u32[144,128]{1,0:T(1,128)}', space=vmem, size = 0x12000, scoped, tag = 'internal scratch']
  %s0 = inlined_call_operand.hbm [shape: f32[2,8,32], index: 0, kind: input, shape index: {}]
  %s1 = inlined_call_operand.vmem [shape: f32[1,32], index: 1, kind: input, shape index: {}]
  %s2 = inlined_call_operand.vmem [shape: f32[1,32], index: 2, kind: input, shape index: {}]
  %s3 = inlined_call_operand.vmem [shape: f32[32,96], index: 3, kind: input, shape index: {}]
  %s4 = inlined_call_operand.hbm [shape: f32[1,96], index: 4, kind: input, shape index: {}]
  %s5 = inlined_call_operand.vmem [shape: f32[32,32], index: 5, kind: input, shape index: {}]
  %s6 = inlined_call_operand.hbm [shape: f32[1,32], index: 6, kind: input, shape index: {}]
  %s7 = inlined_call_operand.vmem [shape: f32[1,32], index: 7, kind: input, shape index: {}]
  %s8 = inlined_call_operand.vmem [shape: f32[1,32], index: 8, kind: input, shape index: {}]
  %s9 = inlined_call_operand.vmem [shape: f32[32,128], index: 9, kind: input, shape index: {}]
  %s10 = inlined_call_operand.hbm [shape: f32[1,128], index: 10, kind: input, shape index: {}]
  %s11 = inlined_call_operand.vmem [shape: f32[32,128], index: 11, kind: input, shape index: {}]
  %s12 = inlined_call_operand.hbm [shape: f32[1,128], index: 12, kind: input, shape index: {}]
  %s13 = inlined_call_operand.vmem [shape: f32[128,32], index: 13, kind: input, shape index: {}]
  %s14 = inlined_call_operand.hbm [shape: f32[1,32], index: 14, kind: input, shape index: {}]
  %s15 = inlined_call_operand.vmem [shape: f32[8,32], index: 15, kind: input, shape index: {}]
  %s16 = inlined_call_operand.vmem [shape: f32[8,32], index: 16, kind: input, shape index: {}]
  %s17 = inlined_call_operand.vmem [shape: f32[32,32], index: 17, kind: input, shape index: {}]
  %s18 = inlined_call_operand.hbm [shape: f32[2,8,32], index: 18, kind: output, shape index: {}]
  %s19 = sld [smem:[#allocation0]]
  $region129: #{attention_layer_forward.1} parent=0
    _
  %s21 = ssub.s32 1, %s19
  %s22 = scalar_select 0, %s21, %s19
  $region1: #{attention_layer_forward.1} parent=0
    #allocation2 [shape = 'u8[8192]{0}', space=vmem, size = 0x2000, scoped, tag = 'input window, operand 0']
    #allocation3 [shape = 's32[2]{0}', space=sflag, size = 0x8, scoped, tag = 'scoped memory for attention_layer_forward.1']
    #allocation4 [shape = 's32[2]{0}', space=sflag, size = 0x8, scoped, tag = 'scoped memory for attention_layer_forward.1']
    #allocation5 [shape = 'u8[512]{0}', space=vmem, size = 0x400, scoped, tag = 'input window, operand 4, single buffered']
    #allocation6 [shape = 's32[1]{0}', space=sflag, size = 0x4, scoped, tag = 'scoped memory for attention_layer_forward.1']
    #allocation7 [shape = 'u8[512]{0}', space=vmem, size = 0x400, scoped, tag = 'input window, operand 6, single buffered']
    #allocation8 [shape = 'u8[512]{0}', space=vmem, size = 0x400, scoped, tag = 'input window, operand 10, single buffered']
    #allocation9 [shape = 's32[1]{0}', space=sflag, size = 0x4, scoped, tag = 'scoped memory for attention_layer_forward.1']
    #allocation10 [shape = 'u8[512]{0}', space=vmem, size = 0x400, scoped, tag = 'input window, operand 12, single buffered']
    #allocation11 [shape = 'u8[512]{0}', space=vmem, size = 0x400, scoped, tag = 'input window, operand 14, single buffered']
    #allocation12 [shape = 's32[1]{0}', space=sflag, size = 0x4, scoped, tag = 'scoped memory for attention_layer_forward.1']
    #allocation13 [shape = 'u8[8192]{0}', space=vmem, size = 0x2000, scoped, tag = 'output window, operand 0']
    %23 = vsyncpa [#allocation3], 0
    %s24 = scalar_lea.sflag [#allocation3], 1
    %25 = vsyncpa %s24, 0
    %26 = vsyncpa [#allocation6], 0
    %27 = vsyncpa [#allocation9], 0
    %28 = vsyncpa [#allocation12], 0
    %29 = vsyncpa [#allocation4], 0
    %s30 = scalar_lea.sflag [#allocation4], 1
    %31 = vsyncpa %s30, 0
    loop: start=0, step=1, limit=4
    $region2: #{attention_layer_forward.1} parent=1 // loop_pre_header
      _
    $region3: #{attention_layer_forward.1} parent=1 // loop_header
      %s33 = sphi 0, %s37
      %p34 = scmp.ge.s32.totalorder %s33, 4
      %s43 = sphi 0, %s45
      %s46 = sphi 0, %s43
      %s47 = sphi 0, %s46
      %s63 = sphi 0, %s47
      %s67 = sphi 0, %s67
      %s69 = sphi 0, %s67
      %s70 = sphi 0, %s69
      %s84 = sphi 0, %s70
      %s88 = sphi 0, %s88
      %s90 = sphi 0, %s88
      %s91 = sphi 0, %s90
      %s105 = sphi 0, %s91
      %s109 = sphi 0, %s109
      %s111 = sphi 0, %s109
      %s112 = sphi 0, %s111
      %s126 = sphi 0, %s112
      %s130 = sphi 0, %s130
      %s132 = sphi 0, %s130
      %s133 = sphi 0, %s132
      %s147 = sphi 0, %s133
      %s151 = sphi 0, %s151
      %s153 = sphi 0, %s151
      %s154 = sphi 0, %s153
      %s168 = sphi 0, %s154
      %s172 = sphi 0, %s172
      %s174 = sphi 0, %s172
      %s175 = sphi 0, %s174
      %s189 = sphi 0, %s175
      %s193 = sphi 0, %s193
      %s195 = sphi 0, %s193
      %s196 = sphi 0, %s195
      %s210 = sphi 0, %s196
      %s214 = sphi 0, %s214
      %s216 = sphi 0, %s214
      %s217 = sphi 0, %s216
      %s231 = sphi 0, %s217
      %s235 = sphi 0, %s235
      %s237 = sphi 0, %s235
      %s238 = sphi 0, %s237
      %s252 = sphi 0, %s238
      %s256 = sphi 0, %s256
      %s258 = sphi 0, %s256
      %s259 = sphi 0, %s258
      %s273 = sphi 0, %s259
      %s277 = sphi 0, %s277
      %s279 = sphi 0, %s277
      %s280 = sphi 0, %s279
      %s294 = sphi 0, %s280
      %s298 = sphi 0, %s298
      %s300 = sphi 0, %s298
      %s301 = sphi 0, %s300
      %s315 = sphi 0, %s301
      %s319 = sphi 0, %s319
      %s321 = sphi 0, %s319
      %s322 = sphi 0, %s321
      %s336 = sphi 0, %s322
      %s340 = sphi 0, %s340
      %s342 = sphi 0, %s340
      %s343 = sphi 0, %s342
      %s357 = sphi 0, %s343
      %s361 = sphi 0, %s361
      %s363 = sphi 0, %s361
      %s364 = sphi 0, %s363
      %s378 = sphi 0, %s364
      %s382 = sphi 0, %s382
      %s384 = sphi 0, %s382
      %s385 = sphi 0, %s384
      %s399 = sphi 0, %s385
      %s403 = sphi 0, %s403
      %s405 = sphi 0, %s403
      %s406 = sphi 0, %s405
      %s420 = sphi 0, %s406
      %s426 = sphi 0, %s428
      %s429 = sphi 0, %s426
      %s430 = sphi 0, %s429
      %s446 = sphi 0, %s430
    $region4: #{attention_layer_forward.1} parent=1 // loop_header_branch
      %36 = sbr.rel (%p34) target = $region8
    $region5: #{attention_layer_forward.1} parent=1 // loop_body
      %s38 = ssub.s32 %s33, 1
      %s39 = ssub.s32 %s33, 2
      %s40 = sadd.s32 %s33, 1
      %s41 = ssub.s32 %s33, %s40
      %p42 = scmp.eq.s32.totalorder %s41, 0
      %s44 = sadd.s32 %s43, 1
      %s45 = scalar_select %p42, %s43, %s44
      %p48 = pneg %p42
      %p49 = scmp.eq.s32.totalorder %s33, 1
      %p50 = por %p48, %p49
      %p51 = scmp.ne.s32.totalorder %s43, %s46
      %p52 = scmp.eq.s32.totalorder %s33, 0
      %p53 = por %p51, %p52
      %p54 = scmp.ne.s32.totalorder %s43, %s46
      %p55 = scmp.eq.s32.totalorder %s38, 1
      %p56 = por %p54, %p55
      %p57 = scmp.ne.s32.totalorder %s46, %s47
      %p58 = scmp.eq.s32.totalorder %s38, 0
      %p59 = por %p57, %p58
      %p60 = scmp.ne.s32.totalorder %s46, %s47
      %p61 = scmp.eq.s32.totalorder %s39, 1
      %p62 = por %p60, %p61
      %p64 = scmp.ne.s32.totalorder %s47, %s63
      %p65 = scmp.eq.s32.totalorder %s39, 0
      %p66 = por %p64, %p65
      %s68 = sadd.s32 %s67, 1
      %p71 = scmp.eq.s32.totalorder %s33, 1
      %p72 = scmp.ne.s32.totalorder %s67, %s69
      %p73 = scmp.eq.s32.totalorder %s33, 0
      %p74 = por %p72, %p73
      %p75 = scmp.ne.s32.totalorder %s67, %s69
      %p76 = scmp.eq.s32.totalorder %s38, 1
      %p77 = por %p75, %p76
      %p78 = scmp.ne.s32.totalorder %s69, %s70
      %p79 = scmp.eq.s32.totalorder %s38, 0
      %p80 = por %p78, %p79
      %p81 = scmp.ne.s32.totalorder %s69, %s70
      %p82 = scmp.eq.s32.totalorder %s39, 1
      %p83 = por %p81, %p82
      %p85 = scmp.ne.s32.totalorder %s70, %s84
      %p86 = scmp.eq.s32.totalorder %s39, 0
      %p87 = por %p85, %p86
      %s89 = sadd.s32 %s88, 1
      %p92 = scmp.eq.s32.totalorder %s33, 1
      %p93 = scmp.ne.s32.totalorder %s88, %s90
      %p94 = scmp.eq.s32.totalorder %s33, 0
      %p95 = por %p93, %p94
      %p96 = scmp.ne.s32.totalorder %s88, %s90
      %p97 = scmp.eq.s32.totalorder %s38, 1
      %p98 = por %p96, %p97
      %p99 = scmp.ne.s32.totalorder %s90, %s91
      %p100 = scmp.eq.s32.totalorder %s38, 0
      %p101 = por %p99, %p100
      %p102 = scmp.ne.s32.totalorder %s90, %s91
      %p103 = scmp.eq.s32.totalorder %s39, 1
      %p104 = por %p102, %p103
      %p106 = scmp.ne.s32.totalorder %s91, %s105
      %p107 = scmp.eq.s32.totalorder %s39, 0
      %p108 = por %p106, %p107
      %s110 = sadd.s32 %s109, 1
      %p113 = scmp.eq.s32.totalorder %s33, 1
      %p114 = scmp.ne.s32.totalorder %s109, %s111
      %p115 = scmp.eq.s32.totalorder %s33, 0
      %p116 = por %p114, %p115
      %p117 = scmp.ne.s32.totalorder %s109, %s111
      %p118 = scmp.eq.s32.totalorder %s38, 1
      %p119 = por %p117, %p118
      %p120 = scmp.ne.s32.totalorder %s111, %s112
      %p121 = scmp.eq.s32.totalorder %s38, 0
      %p122 = por %p120, %p121
      %p123 = scmp.ne.s32.totalorder %s111, %s112
      %p124 = scmp.eq.s32.totalorder %s39, 1
      %p125 = por %p123, %p124
      %p127 = scmp.ne.s32.totalorder %s112, %s126
      %p128 = scmp.eq.s32.totalorder %s39, 0
      %p129 = por %p127, %p128
      %s131 = sadd.s32 %s130, 1
      %p134 = scmp.eq.s32.totalorder %s33, 1
      %p135 = scmp.ne.s32.totalorder %s130, %s132
      %p136 = scmp.eq.s32.totalorder %s33, 0
      %p137 = por %p135, %p136
      %p138 = scmp.ne.s32.totalorder %s130, %s132
      %p139 = scmp.eq.s32.totalorder %s38, 1
      %p140 = por %p138, %p139
      %p141 = scmp.ne.s32.totalorder %s132, %s133
      %p142 = scmp.eq.s32.totalorder %s38, 0
      %p143 = por %p141, %p142
      %p144 = scmp.ne.s32.totalorder %s132, %s133
      %p145 = scmp.eq.s32.totalorder %s39, 1
      %p146 = por %p144, %p145
      %p148 = scmp.ne.s32.totalorder %s133, %s147
      %p149 = scmp.eq.s32.totalorder %s39, 0
      %p150 = por %p148, %p149
      %s152 = sadd.s32 %s151, 1
      %p155 = scmp.eq.s32.totalorder %s33, 1
      %p156 = scmp.ne.s32.totalorder %s151, %s153
      %p157 = scmp.eq.s32.totalorder %s33, 0
      %p158 = por %p156, %p157
      %p159 = scmp.ne.s32.totalorder %s151, %s153
      %p160 = scmp.eq.s32.totalorder %s38, 1
      %p161 = por %p159, %p160
      %p162 = scmp.ne.s32.totalorder %s153, %s154
      %p163 = scmp.eq.s32.totalorder %s38, 0
      %p164 = por %p162, %p163
      %p165 = scmp.ne.s32.totalorder %s153, %s154
      %p166 = scmp.eq.s32.totalorder %s39, 1
      %p167 = por %p165, %p166
      %p169 = scmp.ne.s32.totalorder %s154, %s168
      %p170 = scmp.eq.s32.totalorder %s39, 0
      %p171 = por %p169, %p170
      %s173 = sadd.s32 %s172, 1
      %p176 = scmp.eq.s32.totalorder %s33, 1
      %p177 = scmp.ne.s32.totalorder %s172, %s174
      %p178 = scmp.eq.s32.totalorder %s33, 0
      %p179 = por %p177, %p178
      %p180 = scmp.ne.s32.totalorder %s172, %s174
      %p181 = scmp.eq.s32.totalorder %s38, 1
      %p182 = por %p180, %p181
      %p183 = scmp.ne.s32.totalorder %s174, %s175
      %p184 = scmp.eq.s32.totalorder %s38, 0
      %p185 = por %p183, %p184
      %p186 = scmp.ne.s32.totalorder %s174, %s175
      %p187 = scmp.eq.s32.totalorder %s39, 1
      %p188 = por %p186, %p187
      %p190 = scmp.ne.s32.totalorder %s175, %s189
      %p191 = scmp.eq.s32.totalorder %s39, 0
      %p192 = por %p190, %p191
      %s194 = sadd.s32 %s193, 1
      %p197 = scmp.eq.s32.totalorder %s33, 1
      %p198 = scmp.ne.s32.totalorder %s193, %s195
      %p199 = scmp.eq.s32.totalorder %s33, 0
      %p200 = por %p198, %p199
      %p201 = scmp.ne.s32.totalorder %s193, %s195
      %p202 = scmp.eq.s32.totalorder %s38, 1
      %p203 = por %p201, %p202
      %p204 = scmp.ne.s32.totalorder %s195, %s196
      %p205 = scmp.eq.s32.totalorder %s38, 0
      %p206 = por %p204, %p205
      %p207 = scmp.ne.s32.totalorder %s195, %s196
      %p208 = scmp.eq.s32.totalorder %s39, 1
      %p209 = por %p207, %p208
      %p211 = scmp.ne.s32.totalorder %s196, %s210
      %p212 = scmp.eq.s32.totalorder %s39, 0
      %p213 = por %p211, %p212
      %s215 = sadd.s32 %s214, 1
      %p218 = scmp.eq.s32.totalorder %s33, 1
      %p219 = scmp.ne.s32.totalorder %s214, %s216
      %p220 = scmp.eq.s32.totalorder %s33, 0
      %p221 = por %p219, %p220
      %p222 = scmp.ne.s32.totalorder %s214, %s216
      %p223 = scmp.eq.s32.totalorder %s38, 1
      %p224 = por %p222, %p223
      %p225 = scmp.ne.s32.totalorder %s216, %s217
      %p226 = scmp.eq.s32.totalorder %s38, 0
      %p227 = por %p225, %p226
      %p228 = scmp.ne.s32.totalorder %s216, %s217
      %p229 = scmp.eq.s32.totalorder %s39, 1
      %p230 = por %p228, %p229
      %p232 = scmp.ne.s32.totalorder %s217, %s231
      %p233 = scmp.eq.s32.totalorder %s39, 0
      %p234 = por %p232, %p233
      %s236 = sadd.s32 %s235, 1
      %p239 = scmp.eq.s32.totalorder %s33, 1
      %p240 = scmp.ne.s32.totalorder %s235, %s237
      %p241 = scmp.eq.s32.totalorder %s33, 0
      %p242 = por %p240, %p241
      %p243 = scmp.ne.s32.totalorder %s235, %s237
      %p244 = scmp.eq.s32.totalorder %s38, 1
      %p245 = por %p243, %p244
      %p246 = scmp.ne.s32.totalorder %s237, %s238
      %p247 = scmp.eq.s32.totalorder %s38, 0
      %p248 = por %p246, %p247
      %p249 = scmp.ne.s32.totalorder %s237, %s238
      %p250 = scmp.eq.s32.totalorder %s39, 1
      %p251 = por %p249, %p250
      %p253 = scmp.ne.s32.totalorder %s238, %s252
      %p254 = scmp.eq.s32.totalorder %s39, 0
      %p255 = por %p253, %p254
      %s257 = sadd.s32 %s256, 1
      %p260 = scmp.eq.s32.totalorder %s33, 1
      %p261 = scmp.ne.s32.totalorder %s256, %s258
      %p262 = scmp.eq.s32.totalorder %s33, 0
      %p263 = por %p261, %p262
      %p264 = scmp.ne.s32.totalorder %s256, %s258
      %p265 = scmp.eq.s32.totalorder %s38, 1
      %p266 = por %p264, %p265
      %p267 = scmp.ne.s32.totalorder %s258, %s259
      %p268 = scmp.eq.s32.totalorder %s38, 0
      %p269 = por %p267, %p268
      %p270 = scmp.ne.s32.totalorder %s258, %s259
      %p271 = scmp.eq.s32.totalorder %s39, 1
      %p272 = por %p270, %p271
      %p274 = scmp.ne.s32.totalorder %s259, %s273
      %p275 = scmp.eq.s32.totalorder %s39, 0
      %p276 = por %p274, %p275
      %s278 = sadd.s32 %s277, 1
      %p281 = scmp.eq.s32.totalorder %s33, 1
      %p282 = scmp.ne.s32.totalorder %s277, %s279
      %p283 = scmp.eq.s32.totalorder %s33, 0
      %p284 = por %p282, %p283
      %p285 = scmp.ne.s32.totalorder %s277, %s279
      %p286 = scmp.eq.s32.totalorder %s38, 1
      %p287 = por %p285, %p286
      %p288 = scmp.ne.s32.totalorder %s279, %s280
      %p289 = scmp.eq.s32.totalorder %s38, 0
      %p290 = por %p288, %p289
      %p291 = scmp.ne.s32.totalorder %s279, %s280
      %p292 = scmp.eq.s32.totalorder %s39, 1
      %p293 = por %p291, %p292
      %p295 = scmp.ne.s32.totalorder %s280, %s294
      %p296 = scmp.eq.s32.totalorder %s39, 0
      %p297 = por %p295, %p296
      %s299 = sadd.s32 %s298, 1
      %p302 = scmp.eq.s32.totalorder %s33, 1
      %p303 = scmp.ne.s32.totalorder %s298, %s300
      %p304 = scmp.eq.s32.totalorder %s33, 0
      %p305 = por %p303, %p304
      %p306 = scmp.ne.s32.totalorder %s298, %s300
      %p307 = scmp.eq.s32.totalorder %s38, 1
      %p308 = por %p306, %p307
      %p309 = scmp.ne.s32.totalorder %s300, %s301
      %p310 = scmp.eq.s32.totalorder %s38, 0
      %p311 = por %p309, %p310
      %p312 = scmp.ne.s32.totalorder %s300, %s301
      %p313 = scmp.eq.s32.totalorder %s39, 1
      %p314 = por %p312, %p313
      %p316 = scmp.ne.s32.totalorder %s301, %s315
      %p317 = scmp.eq.s32.totalorder %s39, 0
      %p318 = por %p316, %p317
      %s320 = sadd.s32 %s319, 1
      %p323 = scmp.eq.s32.totalorder %s33, 1
      %p324 = scmp.ne.s32.totalorder %s319, %s321
      %p325 = scmp.eq.s32.totalorder %s33, 0
      %p326 = por %p324, %p325
      %p327 = scmp.ne.s32.totalorder %s319, %s321
      %p328 = scmp.eq.s32.totalorder %s38, 1
      %p329 = por %p327, %p328
      %p330 = scmp.ne.s32.totalorder %s321, %s322
      %p331 = scmp.eq.s32.totalorder %s38, 0
      %p332 = por %p330, %p331
      %p333 = scmp.ne.s32.totalorder %s321, %s322
      %p334 = scmp.eq.s32.totalorder %s39, 1
      %p335 = por %p333, %p334
      %p337 = scmp.ne.s32.totalorder %s322, %s336
      %p338 = scmp.eq.s32.totalorder %s39, 0
      %p339 = por %p337, %p338
      %s341 = sadd.s32 %s340, 1
      %p344 = scmp.eq.s32.totalorder %s33, 1
      %p345 = scmp.ne.s32.totalorder %s340, %s342
      %p346 = scmp.eq.s32.totalorder %s33, 0
      %p347 = por %p345, %p346
      %p348 = scmp.ne.s32.totalorder %s340, %s342
      %p349 = scmp.eq.s32.totalorder %s38, 1
      %p350 = por %p348, %p349
      %p351 = scmp.ne.s32.totalorder %s342, %s343
      %p352 = scmp.eq.s32.totalorder %s38, 0
      %p353 = por %p351, %p352
      %p354 = scmp.ne.s32.totalorder %s342, %s343
      %p355 = scmp.eq.s32.totalorder %s39, 1
      %p356 = por %p354, %p355
      %p358 = scmp.ne.s32.totalorder %s343, %s357
      %p359 = scmp.eq.s32.totalorder %s39, 0
      %p360 = por %p358, %p359
      %s362 = sadd.s32 %s361, 1
      %p365 = scmp.eq.s32.totalorder %s33, 1
      %p366 = scmp.ne.s32.totalorder %s361, %s363
      %p367 = scmp.eq.s32.totalorder %s33, 0
      %p368 = por %p366, %p367
      %p369 = scmp.ne.s32.totalorder %s361, %s363
      %p370 = scmp.eq.s32.totalorder %s38, 1
      %p371 = por %p369, %p370
      %p372 = scmp.ne.s32.totalorder %s363, %s364
      %p373 = scmp.eq.s32.totalorder %s38, 0
      %p374 = por %p372, %p373
      %p375 = scmp.ne.s32.totalorder %s363, %s364
      %p376 = scmp.eq.s32.totalorder %s39, 1
      %p377 = por %p375, %p376
      %p379 = scmp.ne.s32.totalorder %s364, %s378
      %p380 = scmp.eq.s32.totalorder %s39, 0
      %p381 = por %p379, %p380
      %s383 = sadd.s32 %s382, 1
      %p386 = scmp.eq.s32.totalorder %s33, 1
      %p387 = scmp.ne.s32.totalorder %s382, %s384
      %p388 = scmp.eq.s32.totalorder %s33, 0
      %p389 = por %p387, %p388
      %p390 = scmp.ne.s32.totalorder %s382, %s384
      %p391 = scmp.eq.s32.totalorder %s38, 1
      %p392 = por %p390, %p391
      %p393 = scmp.ne.s32.totalorder %s384, %s385
      %p394 = scmp.eq.s32.totalorder %s38, 0
      %p395 = por %p393, %p394
      %p396 = scmp.ne.s32.totalorder %s384, %s385
      %p397 = scmp.eq.s32.totalorder %s39, 1
      %p398 = por %p396, %p397
      %p400 = scmp.ne.s32.totalorder %s385, %s399
      %p401 = scmp.eq.s32.totalorder %s39, 0
      %p402 = por %p400, %p401
      %s404 = sadd.s32 %s403, 1
      %p407 = scmp.eq.s32.totalorder %s33, 1
      %p408 = scmp.ne.s32.totalorder %s403, %s405
      %p409 = scmp.eq.s32.totalorder %s33, 0
      %p410 = por %p408, %p409
      %p411 = scmp.ne.s32.totalorder %s403, %s405
      %p412 = scmp.eq.s32.totalorder %s38, 1
      %p413 = por %p411, %p412
      %p414 = scmp.ne.s32.totalorder %s405, %s406
      %p415 = scmp.eq.s32.totalorder %s38, 0
      %p416 = por %p414, %p415
      %p417 = scmp.ne.s32.totalorder %s405, %s406
      %p418 = scmp.eq.s32.totalorder %s39, 1
      %p419 = por %p417, %p418
      %p421 = scmp.ne.s32.totalorder %s406, %s420
      %p422 = scmp.eq.s32.totalorder %s39, 0
      %p423 = por %p421, %p422
      %s424 = ssub.s32 %s33, %s40
      %p425 = scmp.eq.s32.totalorder %s424, 0
      %s427 = sadd.s32 %s426, 1
      %s428 = scalar_select %p425, %s426, %s427
      %p431 = pneg %p425
      %p432 = scmp.eq.s32.totalorder %s33, 1
      %p433 = por %p431, %p432
      %p434 = scmp.ne.s32.totalorder %s426, %s429
      %p435 = scmp.eq.s32.totalorder %s33, 0
      %p436 = por %p434, %p435
      %p437 = scmp.ne.s32.totalorder %s426, %s429
      %p438 = scmp.eq.s32.totalorder %s38, 1
      %p439 = por %p437, %p438
      %p440 = scmp.ne.s32.totalorder %s429, %s430
      %p441 = scmp.eq.s32.totalorder %s38, 0
      %p442 = por %p440, %p441
      %p443 = scmp.ne.s32.totalorder %s429, %s430
      %p444 = scmp.eq.s32.totalorder %s39, 1
      %p445 = por %p443, %p444
      %p447 = scmp.ne.s32.totalorder %s430, %s446
      %p448 = scmp.eq.s32.totalorder %s39, 0
      %p449 = por %p447, %p448
      %p450 = scmp.le.s32.totalorder 1, %s33
      %p451 = scmp.lt.s32.totalorder %s33, 3
      %p452 = pnand %p450, %p451
      %p453 = pneg %p452
      // Predicated region
      $region9: #{attention_layer_forward.1} parent=5 // pred_check
        _
      $region10: #{attention_layer_forward.1} parent=5 // pred_check_branch
        %455 = sbr.rel (%p452) target = $region12
      $region11: #{attention_layer_forward.1} parent=5 // pred_region
        %s456 = ssub.s32 %s33, 1
        // Predicated region
        $region13: #{attention_layer_forward.1} parent=11 // pred_check
          %p457 = pneg %p80
        $region14: #{attention_layer_forward.1} parent=11 // pred_check_branch
          %459 = sbr.rel (%p457) target = $region16
        $region15: #{attention_layer_forward.1} parent=11 // pred_region
          _
        $region16: #{attention_layer_forward.1} parent=11 // pred_fallthru
          _
        // Predicated region
        $region17: #{attention_layer_forward.1} parent=11 // pred_check
          %p460 = pneg %p101
        $region18: #{attention_layer_forward.1} parent=11 // pred_check_branch
          %462 = sbr.rel (%p460) target = $region20
        $region19: #{attention_layer_forward.1} parent=11 // pred_region
          _
        $region20: #{attention_layer_forward.1} parent=11 // pred_fallthru
          _
        // Predicated region
        $region21: #{attention_layer_forward.1} parent=11 // pred_check
          %p463 = pneg %p122
        $region22: #{attention_layer_forward.1} parent=11 // pred_check_branch
          %465 = sbr.rel (%p463) target = $region24
        $region23: #{attention_layer_forward.1} parent=11 // pred_region
          _
        $region24: #{attention_layer_forward.1} parent=11 // pred_fallthru
          _
        // Predicated region
        $region25: #{attention_layer_forward.1} parent=11 // pred_check
          %p466 = pneg %p143
        $region26: #{attention_layer_forward.1} parent=11 // pred_check_branch
          %468 = sbr.rel (%p466) target = $region28
        $region27: #{attention_layer_forward.1} parent=11 // pred_region
          %s470 = ssub.s32 16, 16
          %471 = vsyncadd [#allocation6], %s470
          %s473 = sshll.u32 [#allocation5], 4
          %s474 = int_to_ptr.vmem [resolvable:$true] %s473
          %476 = dma.hbm_to_vmem [thread:$0]  %s4, 16, %s474, [#allocation6]
        $region28: #{attention_layer_forward.1} parent=11 // pred_fallthru
          _
        // Predicated region
        $region29: #{attention_layer_forward.1} parent=11 // pred_check
          %p477 = pneg %p164
        $region30: #{attention_layer_forward.1} parent=11 // pred_check_branch
          %479 = sbr.rel (%p477) target = $region32
        $region31: #{attention_layer_forward.1} parent=11 // pred_region
          _
        $region32: #{attention_layer_forward.1} parent=11 // pred_fallthru
          _
        // Predicated region
        $region33: #{attention_layer_forward.1} parent=11 // pred_check
          %p480 = pneg %p185
        $region34: #{attention_layer_forward.1} parent=11 // pred_check_branch
          %482 = sbr.rel (%p480) target = $region36
        $region35: #{attention_layer_forward.1} parent=11 // pred_region
          %s484 = ssub.s32 16, 16
          %485 = vsyncadd [#allocation6], %s484
          %s487 = sshll.u32 [#allocation7], 4
          %s488 = int_to_ptr.vmem [resolvable:$true] %s487
          %490 = dma.hbm_to_vmem [thread:$0]  %s6, 16, %s488, [#allocation6]
        $region36: #{attention_layer_forward.1} parent=11 // pred_fallthru
          _
        // Predicated region
        $region37: #{attention_layer_forward.1} parent=11 // pred_check
          %p491 = pneg %p206
        $region38: #{attention_layer_forward.1} parent=11 // pred_check_branch
          %493 = sbr.rel (%p491) target = $region40
        $region39: #{attention_layer_forward.1} parent=11 // pred_region
          _
        $region40: #{attention_layer_forward.1} parent=11 // pred_fallthru
          _
        // Predicated region
        $region41: #{attention_layer_forward.1} parent=11 // pred_check
          %p494 = pneg %p227
        $region42: #{attention_layer_forward.1} parent=11 // pred_check_branch
          %496 = sbr.rel (%p494) target = $region44
        $region43: #{attention_layer_forward.1} parent=11 // pred_region
          _
        $region44: #{attention_layer_forward.1} parent=11 // pred_fallthru
          _
        // Predicated region
        $region45: #{attention_layer_forward.1} parent=11 // pred_check
          %p497 = pneg %p248
        $region46: #{attention_layer_forward.1} parent=11 // pred_check_branch
          %499 = sbr.rel (%p497) target = $region48
        $region47: #{attention_layer_forward.1} parent=11 // pred_region
          _
        $region48: #{attention_layer_forward.1} parent=11 // pred_fallthru
          _
        // Predicated region
        $region49: #{attention_layer_forward.1} parent=11 // pred_check
          %p500 = pneg %p269
        $region50: #{attention_layer_forward.1} parent=11 // pred_check_branch
          %502 = sbr.rel (%p500) target = $region52
        $region51: #{attention_layer_forward.1} parent=11 // pred_region
          %s504 = ssub.s32 16, 16
          %505 = vsyncadd [#allocation9], %s504
          %s507 = sshll.u32 [#allocation8], 4
          %s508 = int_to_ptr.vmem [resolvable:$true] %s507
          %510 = dma.hbm_to_vmem [thread:$0]  %s10, 16, %s508, [#allocation9]
        $region52: #{attention_layer_forward.1} parent=11 // pred_fallthru
          _
        // Predicated region
        $region53: #{attention_layer_forward.1} parent=11 // pred_check
          %p511 = pneg %p290
        $region54: #{attention_layer_forward.1} parent=11 // pred_check_branch
          %513 = sbr.rel (%p511) target = $region56
        $region55: #{attention_layer_forward.1} parent=11 // pred_region
          _
        $region56: #{attention_layer_forward.1} parent=11 // pred_fallthru
          _
        // Predicated region
        $region57: #{attention_layer_forward.1} parent=11 // pred_check
          %p514 = pneg %p311
        $region58: #{attention_layer_forward.1} parent=11 // pred_check_branch
          %516 = sbr.rel (%p514) target = $region60
        $region59: #{attention_layer_forward.1} parent=11 // pred_region
          %s518 = ssub.s32 16, 16
          %519 = vsyncadd [#allocation9], %s518
          %s521 = sshll.u32 [#allocation10], 4
          %s522 = int_to_ptr.vmem [resolvable:$true] %s521
          %524 = dma.hbm_to_vmem [thread:$0]  %s12, 16, %s522, [#allocation9]
        $region60: #{attention_layer_forward.1} parent=11 // pred_fallthru
          _
        // Predicated region
        $region61: #{attention_layer_forward.1} parent=11 // pred_check
          %p525 = pneg %p332
        $region62: #{attention_layer_forward.1} parent=11 // pred_check_branch
          %527 = sbr.rel (%p525) target = $region64
        $region63: #{attention_layer_forward.1} parent=11 // pred_region
          _
        $region64: #{attention_layer_forward.1} parent=11 // pred_fallthru
          _
        // Predicated region
        $region65: #{attention_layer_forward.1} parent=11 // pred_check
          %p528 = pneg %p353
        $region66: #{attention_layer_forward.1} parent=11 // pred_check_branch
          %530 = sbr.rel (%p528) target = $region68
        $region67: #{attention_layer_forward.1} parent=11 // pred_region
          %s532 = ssub.s32 16, 16
          %533 = vsyncadd [#allocation12], %s532
          %s535 = sshll.u32 [#allocation11], 4
          %s536 = int_to_ptr.vmem [resolvable:$true] %s535
          %538 = dma.hbm_to_vmem [thread:$0]  %s14, 16, %s536, [#allocation12]
        $region68: #{attention_layer_forward.1} parent=11 // pred_fallthru
          _
        // Predicated region
        $region69: #{attention_layer_forward.1} parent=11 // pred_check
          %p539 = pneg %p374
        $region70: #{attention_layer_forward.1} parent=11 // pred_check_branch
          %541 = sbr.rel (%p539) target = $region72
        $region71: #{attention_layer_forward.1} parent=11 // pred_region
          _
        $region72: #{attention_layer_forward.1} parent=11 // pred_fallthru
          _
        // Predicated region
        $region73: #{attention_layer_forward.1} parent=11 // pred_check
          %p542 = pneg %p395
        $region74: #{attention_layer_forward.1} parent=11 // pred_check_branch
          %544 = sbr.rel (%p542) target = $region76
        $region75: #{attention_layer_forward.1} parent=11 // pred_region
          _
        $region76: #{attention_layer_forward.1} parent=11 // pred_fallthru
          _
        // Predicated region
        $region77: #{attention_layer_forward.1} parent=11 // pred_check
          %p545 = pneg %p416
        $region78: #{attention_layer_forward.1} parent=11 // pred_check_branch
          %547 = sbr.rel (%p545) target = $region80
        $region79: #{attention_layer_forward.1} parent=11 // pred_region
          _
        $region80: #{attention_layer_forward.1} parent=11 // pred_fallthru
          _
      $region12: #{attention_layer_forward.1} parent=5 // pred_fallthru
        _
      %p548 = scmp.lt.s32.totalorder %s33, 2
      // Predicated region
      $region81: #{attention_layer_forward.1} parent=5 // pred_check
        %p549 = pneg %p548
      $region82: #{attention_layer_forward.1} parent=5 // pred_check_branch
        %551 = sbr.rel (%p549) target = $region84
      $region83: #{attention_layer_forward.1} parent=5 // pred_region
        // Predicated region
        $region85: #{attention_layer_forward.1} parent=83 // pred_check
          %p552 = pneg %p53
        $region86: #{attention_layer_forward.1} parent=83 // pred_check_branch
          %554 = sbr.rel (%p552) target = $region88
        $region87: #{attention_layer_forward.1} parent=83 // pred_region
          %s555 = sand.u32 %s43, 1
          %s556 = scalar_lea.sflag [#allocation3], %s555
          %s557 = sand.u32 %s43, 1
          %s558 = smul.addr %s557, 8
          %s559 = scalar_lea.vmem [#allocation2], %s558
          %s561 = ssub.s32 128, 128
          %562 = vsyncadd %s556, %s561
          %s563 = smul.addr %s33, 128
          %s564 = scalar_lea.hbm %s0, %s563
          %s566 = sshll.u32 %s559, 4
          %s567 = int_to_ptr.vmem [resolvable:$true] %s566
          %569 = dma.hbm_to_vmem [thread:$0]  %s564, 128, %s567, %s556
        $region88: #{attention_layer_forward.1} parent=83 // pred_fallthru
          _
      $region84: #{attention_layer_forward.1} parent=5 // pred_fallthru
        _
      %p570 = scmp.le.s32.totalorder 1, %s33
      %p571 = scmp.lt.s32.totalorder %s33, 3
      %p572 = pnand %p570, %p571
      %p573 = pneg %p572
      // Predicated region
      $region89: #{attention_layer_forward.1} parent=5 // pred_check
        _
      $region90: #{attention_layer_forward.1} parent=5 // pred_check_branch
        %575 = sbr.rel (%p572) target = $region92
      $region91: #{attention_layer_forward.1} parent=5 // pred_region
        %s576 = ssub.s32 %s33, 1
        %s577 = sand.u32 %s46, 1
        %s578 = scalar_lea.sflag [#allocation3], %s577
        %s579 = sand.u32 %s46, 1
        %s580 = smul.addr %s579, 8
        %s581 = scalar_lea.vmem [#allocation2], %s580
        // Predicated region
        $region93: #{attention_layer_forward.1} parent=91 // pred_check
          %p582 = pneg %p59
        $region94: #{attention_layer_forward.1} parent=91 // pred_check_branch
          %584 = sbr.rel (%p582) target = $region96
        $region95: #{attention_layer_forward.1} parent=91 // pred_region
          %585 = dma.done %s578, 128
        $region96: #{attention_layer_forward.1} parent=91 // pred_fallthru
          _
        // Predicated region
        $region97: #{attention_layer_forward.1} parent=91 // pred_check
          %p586 = pneg %p143
        $region98: #{attention_layer_forward.1} parent=91 // pred_check_branch
          %588 = sbr.rel (%p586) target = $region100
        $region99: #{attention_layer_forward.1} parent=91 // pred_region
          %589 = dma.done [#allocation6], 16
        $region100: #{attention_layer_forward.1} parent=91 // pred_fallthru
          _
        // Predicated region
        $region101: #{attention_layer_forward.1} parent=91 // pred_check
          %p590 = pneg %p185
        $region102: #{attention_layer_forward.1} parent=91 // pred_check_branch
          %592 = sbr.rel (%p590) target = $region104
        $region103: #{attention_layer_forward.1} parent=91 // pred_region
          %593 = dma.done [#allocation6], 16
        $region104: #{attention_layer_forward.1} parent=91 // pred_fallthru
          _
        // Predicated region
        $region105: #{attention_layer_forward.1} parent=91 // pred_check
          %p594 = pneg %p269
        $region106: #{attention_layer_forward.1} parent=91 // pred_check_branch
          %596 = sbr.rel (%p594) target = $region108
        $region107: #{attention_layer_forward.1} parent=91 // pred_region
          %597 = dma.done [#allocation9], 16
        $region108: #{attention_layer_forward.1} parent=91 // pred_fallthru
          _
        // Predicated region
        $region109: #{attention_layer_forward.1} parent=91 // pred_check
          %p598 = pneg %p311
        $region110: #{attention_layer_forward.1} parent=91 // pred_check_branch
          %600 = sbr.rel (%p598) target = $region112
        $region111: #{attention_layer_forward.1} parent=91 // pred_region
          %601 = dma.done [#allocation9], 16
        $region112: #{attention_layer_forward.1} parent=91 // pred_fallthru
          _
        // Predicated region
        $region113: #{attention_layer_forward.1} parent=91 // pred_check
          %p602 = pneg %p353
        $region114: #{attention_layer_forward.1} parent=91 // pred_check_branch
          %604 = sbr.rel (%p602) target = $region116
        $region115: #{attention_layer_forward.1} parent=91 // pred_region
          %605 = dma.done [#allocation12], 16
        $region116: #{attention_layer_forward.1} parent=91 // pred_fallthru
          _
        %s606 = sand.u32 %s46, 1
        %s607 = scalar_lea.sflag [#allocation3], %s606
        %s608 = sand.u32 %s46, 1
        %s609 = smul.addr %s608, 8
        %s610 = scalar_lea.vmem [#allocation2], %s609
        %p611 = pneg %p59
        %p612 = pneg %p56
        %p613 = pneg %p80
        %p614 = pneg %p77
        %p615 = pneg %p101
        %p616 = pneg %p98
        %p617 = pneg %p122
        %p618 = pneg %p119
        %p619 = pneg %p143
        %p620 = pneg %p140
        %p621 = pneg %p164
        %p622 = pneg %p161
        %p623 = pneg %p185
        %p624 = pneg %p182
        %p625 = pneg %p206
        %p626 = pneg %p203
        %p627 = pneg %p227
        %p628 = pneg %p224
        %p629 = pneg %p248
        %p630 = pneg %p245
        %p631 = pneg %p269
        %p632 = pneg %p266
        %p633 = pneg %p290
        %p634 = pneg %p287
        %p635 = pneg %p311
        %p636 = pneg %p308
        %p637 = pneg %p332
        %p638 = pneg %p329
        %p639 = pneg %p353
        %p640 = pneg %p350
        %p641 = pneg %p374
        %p642 = pneg %p371
        %p643 = pneg %p395
        %p644 = pneg %p392
        %p645 = pneg %p416
        %p646 = pneg %p413
        %p647 = pneg %p442
        %p648 = pneg %p439
        %s649 = sand.u32 %s429, 1
        %s650 = scalar_lea.sflag [#allocation4], %s649
        %s651 = sand.u32 %s429, 1
        %s652 = smul.addr %s651, 8
        %s653 = scalar_lea.vmem [#allocation13], %s652
        %v655 = vld [vmem:[%s581] sm:$0xff]
        %v656 = vld [vmem:[%s1] sm:$0x1]
        %v657 = vld [vmem:[%s2] sm:$0x1]
        %vm658 = vcmask 261120
        %v659 = vsel %vm658, %v655, 0.0
        %660 = vadd.xlane.f32.xlu0 %v659
        %v661 = vpop.xlane.xlu0 %660
        %v662 = vrcp.pop 32.0
        %v663 = vmul.f32 %v661, %v662
        %v664 = vsub.f32 %v655, %v663
        %v665 = vmul.f32 %v664, %v664
        %v666 = vsel %vm658, %v665, 0.0
        %667 = vadd.xlane.f32.xlu0 %v666
        %v668 = vpop.xlane.xlu0 %667
        %v669 = vmul.f32 %v668, %v662
        %v670 = vadd.f32 %v669, 1e-05
        %v671 = vrsqrt.pop %v670
        %v672 = vmul.f32 %v664, %v671
        %v674 = vlaneseq
        %v675 = vshrl.u32 %v674, 7
        %v676 = vsub.s32 0, %v675
        %v677 = vrot.slane %v656, %v676
        %v679 = vmul.f32 %v672, %v677
        %v681 = vlaneseq
        %v682 = vshrl.u32 %v681, 7
        %v683 = vsub.s32 0, %v682
        %v684 = vrot.slane %v657, %v683
        %v686 = vadd.f32 %v679, %v684
        %v687 = vld [vmem:[%s3] sm:$0xff]
        %v688 = vld [vmem:[%s3 + $0x8] sm:$0xff]
        %v689 = vld [vmem:[%s3 + $0x10] sm:$0xff]
        %v690 = vld [vmem:[%s3 + $0x18] sm:$0xff]
        %v691 = vld [vmem:[#allocation5] sm:$0x1]
        %v693 = vlaneseq
        %v694 = vshrl.u32 %v693, 7
        %v695 = vsub.s32 0, %v694
        %v696 = vrot.slane %v691, %v695
        %v699 = vsel %vm658, %v686, 0
        %701 = vmatprep.subr.mxu0 0.0
        %702 = vmatpush1.msra.mxu0 %v687
        %703 = vmatprep.subr.mxu0 0.0
        %704 = vmatpush1.msra.mxu0 %v688
        %705 = vmatprep.subr.mxu0 0.0
        %706 = vmatpush1.msra.mxu0 %v689
        %707 = vmatprep.subr.mxu0 0.0
        %708 = vmatpush1.msra.mxu0 %v690
        %709 = vmatprep.subr.mxu0 0.0
        %710 = vmatpush1.msra.mxu0 0.0
        %711 = vmatprep.subr.mxu0 0.0
        %712 = vmatpush1.msra.mxu0 0.0
        %713 = vmatprep.subr.mxu0 0.0
        %714 = vmatpush1.msra.mxu0 0.0
        %715 = vmatprep.subr.mxu0 0.0
        %716 = vmatpush1.msra.mxu0 0.0
        %717 = vmatprep.subr.mxu0 0.0
        %718 = vmatpush1.msra.mxu0 0.0
        %719 = vmatprep.subr.mxu0 0.0
        %720 = vmatpush1.msra.mxu0 0.0
        %721 = vmatprep.subr.mxu0 0.0
        %722 = vmatpush1.msra.mxu0 0.0
        %723 = vmatprep.subr.mxu0 0.0
        %724 = vmatpush1.msra.mxu0 0.0
        %725 = vmatprep.subr.mxu0 0.0
        %726 = vmatpush1.msra.mxu0 0.0
        %727 = vmatprep.subr.mxu0 0.0
        %728 = vmatpush1.msra.mxu0 0.0
        %729 = vmatprep.subr.mxu0 0.0
        %730 = vmatpush1.msra.mxu0 0.0
        %731 = vmatprep.subr.mxu0 0.0
        %732 = vmatpush1.msra.mxu0 0.0
        %733 = vmatprep.subr.mxu0 0.0
        %734 = vmatpush1.msra.mxu0 0.0
        %735 = vmatprep.subr.mxu0 0.0
        %736 = vmatpush1.msra.mxu0 0.0
        %737 = vmatprep.subr.mxu0 0.0
        %738 = vmatpush1.msra.mxu0 0.0
        %739 = vmatprep.subr.mxu0 0.0
        %740 = vmatpush1.msra.mxu0 0.0
        %741 = vmatprep.subr.mxu0 0.0
        %742 = vmatpush1.msra.mxu0 0.0
        %743 = vmatprep.subr.mxu0 0.0
        %744 = vmatpush1.msra.mxu0 0.0
        %745 = vmatprep.subr.mxu0 0.0
        %746 = vmatpush1.msra.mxu0 0.0
        %747 = vmatprep.subr.mxu0 0.0
        %748 = vmatpush1.msra.mxu0 0.0
        %749 = vmatprep.subr.mxu0 0.0
        %750 = vmatpush1.msra.mxu0 0.0
        %751 = vmatprep.subr.mxu0 0.0
        %752 = vmatpush1.msra.mxu0 0.0
        %753 = vmatprep.subr.mxu0 0.0
        %754 = vmatpush1.msra.mxu0 0.0
        %755 = vmatprep.subr.mxu0 0.0
        %756 = vmatpush1.msra.mxu0 0.0
        %757 = vmatprep.subr.mxu0 0.0
        %758 = vmatpush1.msra.mxu0 0.0
        %759 = vmatprep.subr.mxu0 0.0
        %760 = vmatpush1.msra.mxu0 0.0
        %761 = vmatprep.subr.mxu0 0.0
        %762 = vmatpush1.msra.mxu0 0.0
        %763 = vmatprep.subr.mxu0 0.0
        %764 = vmatpush1.msra.mxu0 0.0
        %765 = vmatprep.mubr.f32.mxu0 0.0
        %766 = vmatmul.mubr.f32.gmra.mrb[0].mxu0 %v699
        %v767 = vpop.f32.mrb[0].mxu0
        %v768 = vadd.f32 %v696, %v767
        %v769 = vpop.f32.mrb[0].mxu0
        %770 = vdwg.mxu0
        %v771 = vld [vmem:[%s15] sm:$0xff]
        %v772 = vld [vmem:[%s16] sm:$0xff]
        %v773 = vld [vmem:[%s17] sm:$0xff]
        %v774 = vld [vmem:[%s17 + $0x8] sm:$0xff]
        %v775 = vld [vmem:[%s17 + $0x10] sm:$0xff]
        %v776 = vld [vmem:[%s17 + $0x18] sm:$0xff]
        %v777 = vmul.f32 %v768, %v771
        %v779 = vsel %vm658, %v768, 0
        %781 = vmatprep.subr.mxu0 0.0
        %782 = vmatpush1.msra.mxu0 %v773
        %783 = vmatprep.subr.mxu0 0.0
        %784 = vmatpush1.msra.mxu0 %v774
        %785 = vmatprep.subr.mxu0 0.0
        %786 = vmatpush1.msra.mxu0 %v775
        %787 = vmatprep.subr.mxu0 0.0
        %788 = vmatpush1.msra.mxu0 %v776
        %789 = vmatprep.subr.mxu0 0.0
        %790 = vmatpush1.msra.mxu0 0.0
        %791 = vmatprep.subr.mxu0 0.0
        %792 = vmatpush1.msra.mxu0 0.0
        %793 = vmatprep.subr.mxu0 0.0
        %794 = vmatpush1.msra.mxu0 0.0
        %795 = vmatprep.subr.mxu0 0.0
        %796 = vmatpush1.msra.mxu0 0.0
        %797 = vmatprep.subr.mxu0 0.0
        %798 = vmatpush1.msra.mxu0 0.0
        %799 = vmatprep.subr.mxu0 0.0
        %800 = vmatpush1.msra.mxu0 0.0
        %801 = vmatprep.subr.mxu0 0.0
        %802 = vmatpush1.msra.mxu0 0.0
        %803 = vmatprep.subr.mxu0 0.0
        %804 = vmatpush1.msra.mxu0 0.0
        %805 = vmatprep.subr.mxu0 0.0
        %806 = vmatpush1.msra.mxu0 0.0
        %807 = vmatprep.subr.mxu0 0.0
        %808 = vmatpush1.msra.mxu0 0.0
        %809 = vmatprep.subr.mxu0 0.0
        %810 = vmatpush1.msra.mxu0 0.0
        %811 = vmatprep.subr.mxu0 0.0
        %812 = vmatpush1.msra.mxu0 0.0
        %813 = vmatprep.subr.mxu0 0.0
        %814 = vmatpush1.msra.mxu0 0.0
        %815 = vmatprep.subr.mxu0 0.0
        %816 = vmatpush1.msra.mxu0 0.0
        %817 = vmatprep.subr.mxu0 0.0
        %818 = vmatpush1.msra.mxu0 0.0
        %819 = vmatprep.subr.mxu0 0.0
        %820 = vmatpush1.msra.mxu0 0.0
        %821 = vmatprep.subr.mxu0 0.0
        %822 = vmatpush1.msra.mxu0 0.0
        %823 = vmatprep.subr.mxu0 0.0
        %824 = vmatpush1.msra.mxu0 0.0
        %825 = vmatprep.subr.mxu0 0.0
        %826 = vmatpush1.msra.mxu0 0.0
        %827 = vmatprep.subr.mxu0 0.0
        %828 = vmatpush1.msra.mxu0 0.0
        %829 = vmatprep.subr.mxu0 0.0
        %830 = vmatpush1.msra.mxu0 0.0
        %831 = vmatprep.subr.mxu0 0.0
        %832 = vmatpush1.msra.mxu0 0.0
        %833 = vmatprep.subr.mxu0 0.0
        %834 = vmatpush1.msra.mxu0 0.0
        %835 = vmatprep.subr.mxu0 0.0
        %836 = vmatpush1.msra.mxu0 0.0
        %837 = vmatprep.subr.mxu0 0.0
        %838 = vmatpush1.msra.mxu0 0.0
        %839 = vmatprep.subr.mxu0 0.0
        %840 = vmatpush1.msra.mxu0 0.0
        %841 = vmatprep.subr.mxu0 0.0
        %842 = vmatpush1.msra.mxu0 0.0
        %843 = vmatprep.subr.mxu0 0.0
        %844 = vmatpush1.msra.mxu0 0.0
        %845 = vmatprep.mubr.f32.mxu0 0.0
        %846 = vmatmul.mubr.f32.gmra.mrb[0].mxu0 %v779
        %v847 = vpop.f32.mrb[0].mxu0
        %v848 = vadd.f32 0.0, %v847
        %v849 = vpop.f32.mrb[0].mxu0
        %850 = vdwg.mxu0
        %v851 = vmul.f32 %v848, %v772
        %v852 = vadd.f32 %v777, %v851
        %854 = vrot.lane.b32.xlu0 %v771, 32
        %v855 = vpop.permute.xlu0 %854
        %v857 = vmul.f32 %v768, %v855
        %858 = vrot.lane.b32.xlu0 %v768, 96
        %v859 = vpop.permute.xlu0 %858
        %v860 = vsel %vm658, %v859, 0
        %862 = vmatprep.subr.mxu0 0.0
        %863 = vmatpush1.msra.mxu0 %v773
        %864 = vmatprep.subr.mxu0 0.0
        %865 = vmatpush1.msra.mxu0 %v774
        %866 = vmatprep.subr.mxu0 0.0
        %867 = vmatpush1.msra.mxu0 %v775
        %868 = vmatprep.subr.mxu0 0.0
        %869 = vmatpush1.msra.mxu0 %v776
        %870 = vmatprep.subr.mxu0 0.0
        %871 = vmatpush1.msra.mxu0 0.0
        %872 = vmatprep.subr.mxu0 0.0
        %873 = vmatpush1.msra.mxu0 0.0
        %874 = vmatprep.subr.mxu0 0.0
        %875 = vmatpush1.msra.mxu0 0.0
        %876 = vmatprep.subr.mxu0 0.0
        %877 = vmatpush1.msra.mxu0 0.0
        %878 = vmatprep.subr.mxu0 0.0
        %879 = vmatpush1.msra.mxu0 0.0
        %880 = vmatprep.subr.mxu0 0.0
        %881 = vmatpush1.msra.mxu0 0.0
        %882 = vmatprep.subr.mxu0 0.0
        %883 = vmatpush1.msra.mxu0 0.0
        %884 = vmatprep.subr.mxu0 0.0
        %885 = vmatpush1.msra.mxu0 0.0
        %886 = vmatprep.subr.mxu0 0.0
        %887 = vmatpush1.msra.mxu0 0.0
        %888 = vmatprep.subr.mxu0 0.0
        %889 = vmatpush1.msra.mxu0 0.0
        %890 = vmatprep.subr.mxu0 0.0
        %891 = vmatpush1.msra.mxu0 0.0
        %892 = vmatprep.subr.mxu0 0.0
        %893 = vmatpush1.msra.mxu0 0.0
        %894 = vmatprep.subr.mxu0 0.0
        %895 = vmatpush1.msra.mxu0 0.0
        %896 = vmatprep.subr.mxu0 0.0
        %897 = vmatpush1.msra.mxu0 0.0
        %898 = vmatprep.subr.mxu0 0.0
        %899 = vmatpush1.msra.mxu0 0.0
        %900 = vmatprep.subr.mxu0 0.0
        %901 = vmatpush1.msra.mxu0 0.0
        %902 = vmatprep.subr.mxu0 0.0
        %903 = vmatpush1.msra.mxu0 0.0
        %904 = vmatprep.subr.mxu0 0.0
        %905 = vmatpush1.msra.mxu0 0.0
        %906 = vmatprep.subr.mxu0 0.0
        %907 = vmatpush1.msra.mxu0 0.0
        %908 = vmatprep.subr.mxu0 0.0
        %909 = vmatpush1.msra.mxu0 0.0
        %910 = vmatprep.subr.mxu0 0.0
        %911 = vmatpush1.msra.mxu0 0.0
        %912 = vmatprep.subr.mxu0 0.0
        %913 = vmatpush1.msra.mxu0 0.0
        %914 = vmatprep.subr.mxu0 0.0
        %915 = vmatpush1.msra.mxu0 0.0
        %916 = vmatprep.subr.mxu0 0.0
        %917 = vmatpush1.msra.mxu0 0.0
        %918 = vmatprep.subr.mxu0 0.0
        %919 = vmatpush1.msra.mxu0 0.0
        %920 = vmatprep.subr.mxu0 0.0
        %921 = vmatpush1.msra.mxu0 0.0
        %922 = vmatprep.subr.mxu0 0.0
        %923 = vmatpush1.msra.mxu0 0.0
        %924 = vmatprep.subr.mxu0 0.0
        %925 = vmatpush1.msra.mxu0 0.0
        %926 = vmatprep.mubr.f32.mxu0 0.0
        %927 = vmatmul.mubr.f32.gmra.mrb[0].mxu0 %v860
        %v928 = vpop.f32.mrb[0].mxu0
        %v929 = vadd.f32 0.0, %v928
        %v930 = vpop.f32.mrb[0].mxu0
        %931 = vdwg.mxu0
        %v932 = vmul.f32 %v929, %v772
        %934 = vrot.lane.b32.xlu0 %v932, 32
        %v935 = vpop.permute.xlu0 %934
        %v937 = vadd.f32 %v857, %v935
        %v938 = vmul.f32 %v852, 0.35355338
        %v939 = vlaneseq
        %v940 = vshrl.u32 %v939, 7
        %v941 = vlaneseq
        %v942 = vand.u32 %v941, 127
        %vm943 = vcmp.le.s32.totalorder %v942, %v940
        %v944 = vpack.c.bf16 %v938, %v938
        %v945 = vpack.c.bf16 %v937, %v937
        %v946 = vpack.c.bf16 %v768, %v768
        %948 = vrot.lane.b32.xlu0 %v945, 96
        %v949 = vpop.permute.xlu0 %948
        %vm950 = vcmask 64512
        %v952 = vsel %vm950, %v944, 0
        %v955 = vsel %vm950, %v949, 0
        %957 = vmatprep.subr.bf16.mxu0 0
        %958 = vmatpush1.bf16.xpose.msra.mxu0 %v955
        %959 = vmatprep.subr.bf16.mxu0 0
        %960 = vmatpush1.bf16.xpose.msra.mxu0 0
        %961 = vmatprep.subr.bf16.mxu0 0
        %962 = vmatpush1.bf16.xpose.msra.mxu0 0
        %963 = vmatprep.subr.bf16.mxu0 0
        %964 = vmatpush1.bf16.xpose.msra.mxu0 0
        %965 = vmatprep.subr.bf16.mxu0 0
        %966 = vmatpush1.bf16.xpose.msra.mxu0 0
        %967 = vmatprep.subr.bf16.mxu0 0
        %968 = vmatpush1.bf16.xpose.msra.mxu0 0
        %969 = vmatprep.subr.bf16.mxu0 0
        %970 = vmatpush1.bf16.xpose.msra.mxu0 0
        %971 = vmatprep.subr.bf16.mxu0 0
        %972 = vmatpush1.bf16.xpose.msra.mxu0 0
        %973 = vmatprep.subr.bf16.mxu0 0
        %974 = vmatpush1.bf16.xpose.msra.mxu0 0
        %975 = vmatprep.subr.bf16.mxu0 0
        %976 = vmatpush1.bf16.xpose.msra.mxu0 0
        %977 = vmatprep.subr.bf16.mxu0 0
        %978 = vmatpush1.bf16.xpose.msra.mxu0 0
        %979 = vmatprep.subr.bf16.mxu0 0
        %980 = vmatpush1.bf16.xpose.msra.mxu0 0
        %981 = vmatprep.subr.bf16.mxu0 0
        %982 = vmatpush1.bf16.xpose.msra.mxu0 0
        %983 = vmatprep.subr.bf16.mxu0 0
        %984 = vmatpush1.bf16.xpose.msra.mxu0 0
        %985 = vmatprep.subr.bf16.mxu0 0
        %986 = vmatpush1.bf16.xpose.msra.mxu0 0
        %987 = vmatprep.subr.bf16.mxu0 0
        %988 = vmatpush1.bf16.xpose.msra.mxu0 0
        %989 = vmatprep.mubr.bf16.mxu0 0
        %990 = vmatmul.mubr.bf16.gmra.mrb[0].mxu0 %v952
        %v991 = vpop.f32.mrb[0].mxu0
        %v992 = vadd.f32 0.0, %v991
        %v993 = vpop.f32.mrb[0].mxu0
        %v994 = vpop.f32.mrb[0].mxu0
        %v995 = vpop.f32.mrb[0].mxu0
        %996 = vdwg.mxu0
        %v997 = vsel %vm943, %v992, -inf
        %v998 = vsel %vm950, %v997, -inf
        %999 = vmax.xlane.f32.xlu0 %v998
        %v1000 = vpop.xlane.xlu0 %999
        %v1001 = vsub.f32 %v997, %v1000
        %v1002 = vmul.f32 %v1001, 1.442695
        %v1003 = vpow.pop %v1002
        %v1004 = vsel %vm950, %v1003, 0.0
        %1005 = vadd.xlane.f32.xlu0 %v1004
        %v1006 = vpop.xlane.xlu0 %1005
        %v1007 = vpack.c.bf16 %v1003, %v1003
        %1009 = vrot.lane.b32.xlu0 %v946, 64
        %v1010 = vpop.permute.xlu0 %1009
        %v1012 = vsel %vm950, %v1007, 0
        %vm1014 = vcmask 1043456
        %v1016 = vsel %vm1014, %v1010, 0
        %1018 = vmatprep.subr.bf16.mxu0 0
        %1019 = vmatpush1.bf16.msra.mxu0 %v1016
        %1020 = vmatprep.subr.bf16.mxu0 0
        %1021 = vmatpush1.bf16.msra.mxu0 0
        %1022 = vmatprep.subr.bf16.mxu0 0
        %1023 = vmatpush1.bf16.msra.mxu0 0
        %1024 = vmatprep.subr.bf16.mxu0 0
        %1025 = vmatpush1.bf16.msra.mxu0 0
        %1026 = vmatprep.subr.bf16.mxu0 0
        %1027 = vmatpush1.bf16.msra.mxu0 0
        %1028 = vmatprep.subr.bf16.mxu0 0
        %1029 = vmatpush1.bf16.msra.mxu0 0
        %1030 = vmatprep.subr.bf16.mxu0 0
        %1031 = vmatpush1.bf16.msra.mxu0 0
        %1032 = vmatprep.subr.bf16.mxu0 0
        %1033 = vmatpush1.bf16.msra.mxu0 0
        %1034 = vmatprep.subr.bf16.mxu0 0
        %1035 = vmatpush1.bf16.msra.mxu0 0
        %1036 = vmatprep.subr.bf16.mxu0 0
        %1037 = vmatpush1.bf16.msra.mxu0 0
        %1038 = vmatprep.subr.bf16.mxu0 0
        %1039 = vmatpush1.bf16.msra.mxu0 0
        %1040 = vmatprep.subr.bf16.mxu0 0
        %1041 = vmatpush1.bf16.msra.mxu0 0
        %1042 = vmatprep.subr.bf16.mxu0 0
        %1043 = vmatpush1.bf16.msra.mxu0 0
        %1044 = vmatprep.subr.bf16.mxu0 0
        %1045 = vmatpush1.bf16.msra.mxu0 0
        %1046 = vmatprep.subr.bf16.mxu0 0
        %1047 = vmatpush1.bf16.msra.mxu0 0
        %1048 = vmatprep.subr.bf16.mxu0 0
        %1049 = vmatpush1.bf16.msra.mxu0 0
        %1050 = vmatprep.mubr.bf16.mxu0 0
        %1051 = vmatmul.mubr.bf16.gmra.mrb[0].mxu0 %v1012
        %v1052 = vpop.f32.mrb[0].mxu0
        %v1053 = vadd.f32 0.0, %v1052
        %v1054 = vpop.f32.mrb[0].mxu0
        %v1055 = vpop.f32.mrb[0].mxu0
        %v1056 = vpop.f32.mrb[0].mxu0
        %1057 = vdwg.mxu0
        %v1058 = vrcp.pop %v1006
        %v1059 = vmul.f32 %v1053, %v1058
        %1061 = vrot.lane.b32.xlu0 %v944, 120
        %v1062 = vpop.permute.xlu0 %1061
        %1063 = vrot.lane.b32.xlu0 %v945, 88
        %v1064 = vpop.permute.xlu0 %1063
        %v1066 = vsel %vm950, %v1062, 0
        %v1069 = vsel %vm950, %v1064, 0
        %1071 = vmatprep.subr.bf16.mxu0 0
        %1072 = vmatpush1.bf16.xpose.msra.mxu0 %v1069
        %1073 = vmatprep.subr.bf16.mxu0 0
        %1074 = vmatpush1.bf16.xpose.msra.mxu0 0
        %1075 = vmatprep.subr.bf16.mxu0 0
        %1076 = vmatpush1.bf16.xpose.msra.mxu0 0
        %1077 = vmatprep.subr.bf16.mxu0 0
        %1078 = vmatpush1.bf16.xpose.msra.mxu0 0
        %1079 = vmatprep.subr.bf16.mxu0 0
        %1080 = vmatpush1.bf16.xpose.msra.mxu0 0
        %1081 = vmatprep.subr.bf16.mxu0 0
        %1082 = vmatpush1.bf16.xpose.msra.mxu0 0
        %1083 = vmatprep.subr.bf16.mxu0 0
        %1084 = vmatpush1.bf16.xpose.msra.mxu0 0
        %1085 = vmatprep.subr.bf16.mxu0 0
        %1086 = vmatpush1.bf16.xpose.msra.mxu0 0
        %1087 = vmatprep.subr.bf16.mxu0 0
        %1088 = vmatpush1.bf16.xpose.msra.mxu0 0
        %1089 = vmatprep.subr.bf16.mxu0 0
        %1090 = vmatpush1.bf16.xpose.msra.mxu0 0
        %1091 = vmatprep.subr.bf16.mxu0 0
        %1092 = vmatpush1.bf16.xpose.msra.mxu0 0
        %1093 = vmatprep.subr.bf16.mxu0 0
        %1094 = vmatpush1.bf16.xpose.msra.mxu0 0
        %1095 = vmatprep.subr.bf16.mxu0 0
        %1096 = vmatpush1.bf16.xpose.msra.mxu0 0
        %1097 = vmatprep.subr.bf16.mxu0 0
        %1098 = vmatpush1.bf16.xpose.msra.mxu0 0
        %1099 = vmatprep.subr.bf16.mxu0 0
        %1100 = vmatpush1.bf16.xpose.msra.mxu0 0
        %1101 = vmatprep.subr.bf16.mxu0 0
        %1102 = vmatpush1.bf16.xpose.msra.mxu0 0
        %1103 = vmatprep.mubr.bf16.mxu0 0
        %1104 = vmatmul.mubr.bf16.gmra.mrb[0].mxu0 %v1066
        %v1105 = vpop.f32.mrb[0].mxu0
        %v1106 = vadd.f32 0.0, %v1105
        %v1107 = vpop.f32.mrb[0].mxu0
        %v1108 = vpop.f32.mrb[0].mxu0
        %v1109 = vpop.f32.mrb[0].mxu0
        %1110 = vdwg.mxu0
        %v1111 = vsel %vm943, %v1106, -inf
        %v1112 = vsel %vm950, %v1111, -inf
        %1113 = vmax.xlane.f32.xlu0 %v1112
        %v1114 = vpop.xlane.xlu0 %1113
        %v1115 = vsub.f32 %v1111, %v1114
        %v1116 = vmul.f32 %v1115, 1.442695
        %v1117 = vpow.pop %v1116
        %v1118 = vsel %vm950, %v1117, 0.0
        %1119 = vadd.xlane.f32.xlu0 %v1118
        %v1120 = vpop.xlane.xlu0 %1119
        %v1121 = vpack.c.bf16 %v1117, %v1117
        %1122 = vrot.lane.b32.xlu0 %v946, 56
        %v1123 = vpop.permute.xlu0 %1122
        %v1125 = vsel %vm950, %v1121, 0
        %v1128 = vsel %vm1014, %v1123, 0
        %1130 = vmatprep.subr.bf16.mxu0 0
        %1131 = vmatpush1.bf16.msra.mxu0 %v1128
        %1132 = vmatprep.subr.bf16.mxu0 0
        %1133 = vmatpush1.bf16.msra.mxu0 0
        %1134 = vmatprep.subr.bf16.mxu0 0
        %1135 = vmatpush1.bf16.msra.mxu0 0
        %1136 = vmatprep.subr.bf16.mxu0 0
        %1137 = vmatpush1.bf16.msra.mxu0 0
        %1138 = vmatprep.subr.bf16.mxu0 0
        %1139 = vmatpush1.bf16.msra.mxu0 0
        %1140 = vmatprep.subr.bf16.mxu0 0
        %1141 = vmatpush1.bf16.msra.mxu0 0
        %1142 = vmatprep.subr.bf16.mxu0 0
        %1143 = vmatpush1.bf16.msra.mxu0 0
        %1144 = vmatprep.subr.bf16.mxu0 0
        %1145 = vmatpush1.bf16.msra.mxu0 0
        %1146 = vmatprep.subr.bf16.mxu0 0
        %1147 = vmatpush1.bf16.msra.mxu0 0
        %1148 = vmatprep.subr.bf16.mxu0 0
        %1149 = vmatpush1.bf16.msra.mxu0 0
        %1150 = vmatprep.subr.bf16.mxu0 0
        %1151 = vmatpush1.bf16.msra.mxu0 0
        %1152 = vmatprep.subr.bf16.mxu0 0
        %1153 = vmatpush1.bf16.msra.mxu0 0
        %1154 = vmatprep.subr.bf16.mxu0 0
        %1155 = vmatpush1.bf16.msra.mxu0 0
        %1156 = vmatprep.subr.bf16.mxu0 0
        %1157 = vmatpush1.bf16.msra.mxu0 0
        %1158 = vmatprep.subr.bf16.mxu0 0
        %1159 = vmatpush1.bf16.msra.mxu0 0
        %1160 = vmatprep.subr.bf16.mxu0 0
        %1161 = vmatpush1.bf16.msra.mxu0 0
        %1162 = vmatprep.mubr.bf16.mxu0 0
        %1163 = vmatmul.mubr.bf16.gmra.mrb[0].mxu0 %v1125
        %v1164 = vpop.f32.mrb[0].mxu0
        %v1165 = vadd.f32 0.0, %v1164
        %v1166 = vpop.f32.mrb[0].mxu0
        %v1167 = vpop.f32.mrb[0].mxu0
        %v1168 = vpop.f32.mrb[0].mxu0
        %1169 = vdwg.mxu0
        %v1170 = vrcp.pop %v1120
        %v1171 = vmul.f32 %v1165, %v1170
        %1172 = vrot.lane.b32.xlu0 %v944, 112
        %v1173 = vpop.permute.xlu0 %1172
        %1174 = vrot.lane.b32.xlu0 %v945, 80
        %v1175 = vpop.permute.xlu0 %1174
        %v1177 = vsel %vm950, %v1173, 0
        %v1180 = vsel %vm950, %v1175, 0
        %1182 = vmatprep.subr.bf16.mxu0 0
        %1183 = vmatpush1.bf16.xpose.msra.mxu0 %v1180
        %1184 = vmatprep.subr.bf16.mxu0 0
        %1185 = vmatpush1.bf16.xpose.msra.mxu0 0
        %1186 = vmatprep.subr.bf16.mxu0 0
        %1187 = vmatpush1.bf16.xpose.msra.mxu0 0
        %1188 = vmatprep.subr.bf16.mxu0 0
        %1189 = vmatpush1.bf16.xpose.msra.mxu0 0
        %1190 = vmatprep.subr.bf16.mxu0 0
        %1191 = vmatpush1.bf16.xpose.msra.mxu0 0
        %1192 = vmatprep.subr.bf16.mxu0 0
        %1193 = vmatpush1.bf16.xpose.msra.mxu0 0
        %1194 = vmatprep.subr.bf16.mxu0 0
        %1195 = vmatpush1.bf16.xpose.msra.mxu0 0
        %1196 = vmatprep.subr.bf16.mxu0 0
        %1197 = vmatpush1.bf16.xpose.msra.mxu0 0
        %1198 = vmatprep.subr.bf16.mxu0 0
        %1199 = vmatpush1.bf16.xpose.msra.mxu0 0
        %1200 = vmatprep.subr.bf16.mxu0 0
        %1201 = vmatpush1.bf16.xpose.msra.mxu0 0
        %1202 = vmatprep.subr.bf16.mxu0 0
        %1203 = vmatpush1.bf16.xpose.msra.mxu0 0
        %1204 = vmatprep.subr.bf16.mxu0 0
        %1205 = vmatpush1.bf16.xpose.msra.mxu0 0
        %1206 = vmatprep.subr.bf16.mxu0 0
        %1207 = vmatpush1.bf16.xpose.msra.mxu0 0
        %1208 = vmatprep.subr.bf16.mxu0 0
        %1209 = vmatpush1.bf16.xpose.msra.mxu0 0
        %1210 = vmatprep.subr.bf16.mxu0 0
        %1211 = vmatpush1.bf16.xpose.msra.mxu0 0
        %1212 = vmatprep.subr.bf16.mxu0 0
        %1213 = vmatpush1.bf16.xpose.msra.mxu0 0
        %1214 = vmatprep.mubr.bf16.mxu0 0
        %1215 = vmatmul.mubr.bf16.gmra.mrb[0].mxu0 %v1177
        %v1216 = vpop.f32.mrb[0].mxu0
        %v1217 = vadd.f32 0.0, %v1216
        %v1218 = vpop.f32.mrb[0].mxu0
        %v1219 = vpop.f32.mrb[0].mxu0
        %v1220 = vpop.f32.mrb[0].mxu0
        %1221 = vdwg.mxu0
        %v1222 = vsel %vm943, %v1217, -inf
        %v1223 = vsel %vm950, %v1222, -inf
        %1224 = vmax.xlane.f32.xlu0 %v1223
        %v1225 = vpop.xlane.xlu0 %1224
        %v1226 = vsub.f32 %v1222, %v1225
        %v1227 = vmul.f32 %v1226, 1.442695
        %v1228 = vpow.pop %v1227
        %v1229 = vsel %vm950, %v1228, 0.0
        %1230 = vadd.xlane.f32.xlu0 %v1229
        %v1231 = vpop.xlane.xlu0 %1230
        %v1232 = vpack.c.bf16 %v1228, %v1228
        %1233 = vrot.lane.b32.xlu0 %v946, 48
        %v1234 = vpop.permute.xlu0 %1233
        %v1236 = vsel %vm950, %v1232, 0
        %v1239 = vsel %vm1014, %v1234, 0
        %1241 = vmatprep.subr.bf16.mxu0 0
        %1242 = vmatpush1.bf16.msra.mxu0 %v1239
        %1243 = vmatprep.subr.bf16.mxu0 0
        %1244 = vmatpush1.bf16.msra.mxu0 0
        %1245 = vmatprep.subr.bf16.mxu0 0
        %1246 = vmatpush1.bf16.msra.mxu0 0
        %1247 = vmatprep.subr.bf16.mxu0 0
        %1248 = vmatpush1.bf16.msra.mxu0 0
        %1249 = vmatprep.subr.bf16.mxu0 0
        %1250 = vmatpush1.bf16.msra.mxu0 0
        %1251 = vmatprep.subr.bf16.mxu0 0
        %1252 = vmatpush1.bf16.msra.mxu0 0
        %1253 = vmatprep.subr.bf16.mxu0 0
        %1254 = vmatpush1.bf16.msra.mxu0 0
        %1255 = vmatprep.subr.bf16.mxu0 0
        %1256 = vmatpush1.bf16.msra.mxu0 0
        %1257 = vmatprep.subr.bf16.mxu0 0
        %1258 = vmatpush1.bf16.msra.mxu0 0
        %1259 = vmatprep.subr.bf16.mxu0 0
        %1260 = vmatpush1.bf16.msra.mxu0 0
        %1261 = vmatprep.subr.bf16.mxu0 0
        %1262 = vmatpush1.bf16.msra.mxu0 0
        %1263 = vmatprep.subr.bf16.mxu0 0
        %1264 = vmatpush1.bf16.msra.mxu0 0
        %1265 = vmatprep.subr.bf16.mxu0 0
        %1266 = vmatpush1.bf16.msra.mxu0 0
        %1267 = vmatprep.subr.bf16.mxu0 0
        %1268 = vmatpush1.bf16.msra.mxu0 0
        %1269 = vmatprep.subr.bf16.mxu0 0
        %1270 = vmatpush1.bf16.msra.mxu0 0
        %1271 = vmatprep.subr.bf16.mxu0 0
        %1272 = vmatpush1.bf16.msra.mxu0 0
        %1273 = vmatprep.mubr.bf16.mxu0 0
        %1274 = vmatmul.mubr.bf16.gmra.mrb[0].mxu0 %v1236
        %v1275 = vpop.f32.mrb[0].mxu0
        %v1276 = vadd.f32 0.0, %v1275
        %v1277 = vpop.f32.mrb[0].mxu0
        %v1278 = vpop.f32.mrb[0].mxu0
        %v1279 = vpop.f32.mrb[0].mxu0
        %1280 = vdwg.mxu0
        %v1281 = vrcp.pop %v1231
        %v1282 = vmul.f32 %v1276, %v1281
        %1283 = vrot.lane.b32.xlu0 %v944, 104
        %v1284 = vpop.permute.xlu0 %1283
        %1285 = vrot.lane.b32.xlu0 %v945, 72
        %v1286 = vpop.permute.xlu0 %1285
        %v1288 = vsel %vm950, %v1284, 0
        %v1291 = vsel %vm950, %v1286, 0
        %1293 = vmatprep.subr.bf16.mxu0 0
        %1294 = vmatpush1.bf16.xpose.msra.mxu0 %v1291
        %1295 = vmatprep.subr.bf16.mxu0 0
        %1296 = vmatpush1.bf16.xpose.msra.mxu0 0
        %1297 = vmatprep.subr.bf16.mxu0 0
        %1298 = vmatpush1.bf16.xpose.msra.mxu0 0
        %1299 = vmatprep.subr.bf16.mxu0 0
        %1300 = vmatpush1.bf16.xpose.msra.mxu0 0
        %1301 = vmatprep.subr.bf16.mxu0 0
        %1302 = vmatpush1.bf16.xpose.msra.mxu0 0
        %1303 = vmatprep.subr.bf16.mxu0 0
        %1304 = vmatpush1.bf16.xpose.msra.mxu0 0
        %1305 = vmatprep.subr.bf16.mxu0 0
        %1306 = vmatpush1.bf16.xpose.msra.mxu0 0
        %1307 = vmatprep.subr.bf16.mxu0 0
        %1308 = vmatpush1.bf16.xpose.msra.mxu0 0
        %1309 = vmatprep.subr.bf16.mxu0 0
        %1310 = vmatpush1.bf16.xpose.msra.mxu0 0
        %1311 = vmatprep.subr.bf16.mxu0 0
        %1312 = vmatpush1.bf16.xpose.msra.mxu0 0
        %1313 = vmatprep.subr.bf16.mxu0 0
        %1314 = vmatpush1.bf16.xpose.msra.mxu0 0
        %1315 = vmatprep.subr.bf16.mxu0 0
        %1316 = vmatpush1.bf16.xpose.msra.mxu0 0
        %1317 = vmatprep.subr.bf16.mxu0 0
        %1318 = vmatpush1.bf16.xpose.msra.mxu0 0
        %1319 = vmatprep.subr.bf16.mxu0 0
        %1320 = vmatpush1.bf16.xpose.msra.mxu0 0
        %1321 = vmatprep.subr.bf16.mxu0 0
        %1322 = vmatpush1.bf16.xpose.msra.mxu0 0
        %1323 = vmatprep.subr.bf16.mxu0 0
        %1324 = vmatpush1.bf16.xpose.msra.mxu0 0
        %1325 = vmatprep.mubr.bf16.mxu0 0
        %1326 = vmatmul.mubr.bf16.gmra.mrb[0].mxu0 %v1288
        %v1327 = vpop.f32.mrb[0].mxu0
        %v1328 = vadd.f32 0.0, %v1327
        %v1329 = vpop.f32.mrb[0].mxu0
        %v1330 = vpop.f32.mrb[0].mxu0
        %v1331 = vpop.f32.mrb[0].mxu0
        %1332 = vdwg.mxu0
        %v1333 = vsel %vm943, %v1328, -inf
        %v1334 = vsel %vm950, %v1333, -inf
        %1335 = vmax.xlane.f32.xlu0 %v1334
        %v1336 = vpop.xlane.xlu0 %1335
        %v1337 = vsub.f32 %v1333, %v1336
        %v1338 = vmul.f32 %v1337, 1.442695
        %v1339 = vpow.pop %v1338
        %v1340 = vsel %vm950, %v1339, 0.0
        %1341 = vadd.xlane.f32.xlu0 %v1340
        %v1342 = vpop.xlane.xlu0 %1341
        %v1343 = vpack.c.bf16 %v1339, %v1339
        %1344 = vrot.lane.b32.xlu0 %v946, 40
        %v1345 = vpop.permute.xlu0 %1344
        %v1347 = vsel %vm950, %v1343, 0
        %v1350 = vsel %vm1014, %v1345, 0
        %1352 = vmatprep.subr.bf16.mxu0 0
        %1353 = vmatpush1.bf16.msra.mxu0 %v1350
        %1354 = vmatprep.subr.bf16.mxu0 0
        %1355 = vmatpush1.bf16.msra.mxu0 0
        %1356 = vmatprep.subr.bf16.mxu0 0
        %1357 = vmatpush1.bf16.msra.mxu0 0
        %1358 = vmatprep.subr.bf16.mxu0 0
        %1359 = vmatpush1.bf16.msra.mxu0 0
        %1360 = vmatprep.subr.bf16.mxu0 0
        %1361 = vmatpush1.bf16.msra.mxu0 0
        %1362 = vmatprep.subr.bf16.mxu0 0
        %1363 = vmatpush1.bf16.msra.mxu0 0
        %1364 = vmatprep.subr.bf16.mxu0 0
        %1365 = vmatpush1.bf16.msra.mxu0 0
        %1366 = vmatprep.subr.bf16.mxu0 0
        %1367 = vmatpush1.bf16.msra.mxu0 0
        %1368 = vmatprep.subr.bf16.mxu0 0
        %1369 = vmatpush1.bf16.msra.mxu0 0
        %1370 = vmatprep.subr.bf16.mxu0 0
        %1371 = vmatpush1.bf16.msra.mxu0 0
        %1372 = vmatprep.subr.bf16.mxu0 0
        %1373 = vmatpush1.bf16.msra.mxu0 0
        %1374 = vmatprep.subr.bf16.mxu0 0
        %1375 = vmatpush1.bf16.msra.mxu0 0
        %1376 = vmatprep.subr.bf16.mxu0 0
        %1377 = vmatpush1.bf16.msra.mxu0 0
        %1378 = vmatprep.subr.bf16.mxu0 0
        %1379 = vmatpush1.bf16.msra.mxu0 0
        %1380 = vmatprep.subr.bf16.mxu0 0
        %1381 = vmatpush1.bf16.msra.mxu0 0
        %1382 = vmatprep.subr.bf16.mxu0 0
        %1383 = vmatpush1.bf16.msra.mxu0 0
        %1384 = vmatprep.mubr.bf16.mxu0 0
        %1385 = vmatmul.mubr.bf16.gmra.mrb[0].mxu0 %v1347
        %v1386 = vpop.f32.mrb[0].mxu0
        %v1387 = vadd.f32 0.0, %v1386
        %v1388 = vpop.f32.mrb[0].mxu0
        %v1389 = vpop.f32.mrb[0].mxu0
        %v1390 = vpop.f32.mrb[0].mxu0
        %1391 = vdwg.mxu0
        %v1392 = vrcp.pop %v1342
        %v1393 = vmul.f32 %v1387, %v1392
        %1395 = vrot.lane.b32.xlu0 %v1171, 8
        %v1396 = vpop.permute.xlu0 %1395
        %1399 = vrot.lane.b32.xlu0 %v1282, 16
        %v1400 = vpop.permute.xlu0 %1399
        %1403 = vrot.lane.b32.xlu0 %v1393, 24
        %v1404 = vpop.permute.xlu0 %1403
        %v1406 = vsel %vm950, %v1059, %v1396
        %vm1407 = vcmask 130048
        %v1408 = vsel %vm1407, %v1406, %v1400
        %vm1409 = vcmask 195584
        %v1410 = vsel %vm1409, %v1408, %v1404
        %v1411 = vld [vmem:[%s5] sm:$0xff]
        %v1412 = vld [vmem:[%s5 + $0x8] sm:$0xff]
        %v1413 = vld [vmem:[%s5 + $0x10] sm:$0xff]
        %v1414 = vld [vmem:[%s5 + $0x18] sm:$0xff]
        %v1416 = vsel %vm658, %v1410, 0
        %1418 = vmatprep.subr.mxu0 0.0
        %1419 = vmatpush1.msra.mxu0 %v1411
        %1420 = vmatprep.subr.mxu0 0.0
        %1421 = vmatpush1.msra.mxu0 %v1412
        %1422 = vmatprep.subr.mxu0 0.0
        %1423 = vmatpush1.msra.mxu0 %v1413
        %1424 = vmatprep.subr.mxu0 0.0
        %1425 = vmatpush1.msra.mxu0 %v1414
        %1426 = vmatprep.subr.mxu0 0.0
        %1427 = vmatpush1.msra.mxu0 0.0
        %1428 = vmatprep.subr.mxu0 0.0
        %1429 = vmatpush1.msra.mxu0 0.0
        %1430 = vmatprep.subr.mxu0 0.0
        %1431 = vmatpush1.msra.mxu0 0.0
        %1432 = vmatprep.subr.mxu0 0.0
        %1433 = vmatpush1.msra.mxu0 0.0
        %1434 = vmatprep.subr.mxu0 0.0
        %1435 = vmatpush1.msra.mxu0 0.0
        %1436 = vmatprep.subr.mxu0 0.0
        %1437 = vmatpush1.msra.mxu0 0.0
        %1438 = vmatprep.subr.mxu0 0.0
        %1439 = vmatpush1.msra.mxu0 0.0
        %1440 = vmatprep.subr.mxu0 0.0
        %1441 = vmatpush1.msra.mxu0 0.0
        %1442 = vmatprep.subr.mxu0 0.0
        %1443 = vmatpush1.msra.mxu0 0.0
        %1444 = vmatprep.subr.mxu0 0.0
        %1445 = vmatpush1.msra.mxu0 0.0
        %1446 = vmatprep.subr.mxu0 0.0
        %1447 = vmatpush1.msra.mxu0 0.0
        %1448 = vmatprep.subr.mxu0 0.0
        %1449 = vmatpush1.msra.mxu0 0.0
        %1450 = vmatprep.subr.mxu0 0.0
        %1451 = vmatpush1.msra.mxu0 0.0
        %1452 = vmatprep.subr.mxu0 0.0
        %1453 = vmatpush1.msra.mxu0 0.0
        %1454 = vmatprep.subr.mxu0 0.0
        %1455 = vmatpush1.msra.mxu0 0.0
        %1456 = vmatprep.subr.mxu0 0.0
        %1457 = vmatpush1.msra.mxu0 0.0
        %1458 = vmatprep.subr.mxu0 0.0
        %1459 = vmatpush1.msra.mxu0 0.0
        %1460 = vmatprep.subr.mxu0 0.0
        %1461 = vmatpush1.msra.mxu0 0.0
        %1462 = vmatprep.subr.mxu0 0.0
        %1463 = vmatpush1.msra.mxu0 0.0
        %1464 = vmatprep.subr.mxu0 0.0
        %1465 = vmatpush1.msra.mxu0 0.0
        %1466 = vmatprep.subr.mxu0 0.0
        %1467 = vmatpush1.msra.mxu0 0.0
        %1468 = vmatprep.subr.mxu0 0.0
        %1469 = vmatpush1.msra.mxu0 0.0
        %1470 = vmatprep.subr.mxu0 0.0
        %1471 = vmatpush1.msra.mxu0 0.0
        %1472 = vmatprep.subr.mxu0 0.0
        %1473 = vmatpush1.msra.mxu0 0.0
        %1474 = vmatprep.subr.mxu0 0.0
        %1475 = vmatpush1.msra.mxu0 0.0
        %1476 = vmatprep.subr.mxu0 0.0
        %1477 = vmatpush1.msra.mxu0 0.0
        %1478 = vmatprep.subr.mxu0 0.0
        %1479 = vmatpush1.msra.mxu0 0.0
        %1480 = vmatprep.subr.mxu0 0.0
        %1481 = vmatpush1.msra.mxu0 0.0
        %1482 = vmatprep.mubr.f32.mxu0 0.0
        %1483 = vmatmul.mubr.f32.gmra.mrb[0].mxu0 %v1416
        %v1484 = vpop.f32.mrb[0].mxu0
        %v1485 = vadd.f32 0.0, %v1484
        %v1486 = vpop.f32.mrb[0].mxu0
        %1487 = vdwg.mxu0
        %v1488 = vadd.f32 %v655, %v1485
        %v1489 = vld [vmem:[#allocation7] sm:$0x1]
        %v1491 = vlaneseq
        %v1492 = vshrl.u32 %v1491, 7
        %v1493 = vsub.s32 0, %v1492
        %v1494 = vrot.slane %v1489, %v1493
        %v1496 = vadd.f32 %v1488, %v1494
        %v1497 = vld [vmem:[%s7] sm:$0x1]
        %v1498 = vld [vmem:[%s8] sm:$0x1]
        %v1499 = vsel %vm658, %v1496, 0.0
        %1500 = vadd.xlane.f32.xlu0 %v1499
        %v1501 = vpop.xlane.xlu0 %1500
        %v1502 = vmul.f32 %v1501, %v662
        %v1503 = vsub.f32 %v1496, %v1502
        %v1504 = vmul.f32 %v1503, %v1503
        %v1505 = vsel %vm658, %v1504, 0.0
        %1506 = vadd.xlane.f32.xlu0 %v1505
        %v1507 = vpop.xlane.xlu0 %1506
        %v1508 = vmul.f32 %v1507, %v662
        %v1509 = vadd.f32 %v1508, 1e-05
        %v1510 = vrsqrt.pop %v1509
        %v1511 = vmul.f32 %v1503, %v1510
        %v1513 = vlaneseq
        %v1514 = vshrl.u32 %v1513, 7
        %v1515 = vsub.s32 0, %v1514
        %v1516 = vrot.slane %v1497, %v1515
        %v1518 = vmul.f32 %v1511, %v1516
        %v1520 = vlaneseq
        %v1521 = vshrl.u32 %v1520, 7
        %v1522 = vsub.s32 0, %v1521
        %v1523 = vrot.slane %v1498, %v1522
        %v1525 = vadd.f32 %v1518, %v1523
        %v1526 = vld [vmem:[%s9] sm:$0xff]
        %v1527 = vld [vmem:[%s9 + $0x8] sm:$0xff]
        %v1528 = vld [vmem:[%s9 + $0x10] sm:$0xff]
        %v1529 = vld [vmem:[%s9 + $0x18] sm:$0xff]
        %v1530 = vld [vmem:[#allocation8] sm:$0x1]
        %v1532 = vlaneseq
        %v1533 = vshrl.u32 %v1532, 7
        %v1534 = vsub.s32 0, %v1533
        %v1535 = vrot.slane %v1530, %v1534
        %v1538 = vsel %vm658, %v1525, 0
        %1540 = vmatprep.subr.mxu0 0.0
        %1541 = vmatpush1.msra.mxu0 %v1526
        %1542 = vmatprep.subr.mxu0 0.0
        %1543 = vmatpush1.msra.mxu0 %v1527
        %1544 = vmatprep.subr.mxu0 0.0
        %1545 = vmatpush1.msra.mxu0 %v1528
        %1546 = vmatprep.subr.mxu0 0.0
        %1547 = vmatpush1.msra.mxu0 %v1529
        %1548 = vmatprep.subr.mxu0 0.0
        %1549 = vmatpush1.msra.mxu0 0.0
        %1550 = vmatprep.subr.mxu0 0.0
        %1551 = vmatpush1.msra.mxu0 0.0
        %1552 = vmatprep.subr.mxu0 0.0
        %1553 = vmatpush1.msra.mxu0 0.0
        %1554 = vmatprep.subr.mxu0 0.0
        %1555 = vmatpush1.msra.mxu0 0.0
        %1556 = vmatprep.subr.mxu0 0.0
        %1557 = vmatpush1.msra.mxu0 0.0
        %1558 = vmatprep.subr.mxu0 0.0
        %1559 = vmatpush1.msra.mxu0 0.0
        %1560 = vmatprep.subr.mxu0 0.0
        %1561 = vmatpush1.msra.mxu0 0.0
        %1562 = vmatprep.subr.mxu0 0.0
        %1563 = vmatpush1.msra.mxu0 0.0
        %1564 = vmatprep.subr.mxu0 0.0
        %1565 = vmatpush1.msra.mxu0 0.0
        %1566 = vmatprep.subr.mxu0 0.0
        %1567 = vmatpush1.msra.mxu0 0.0
        %1568 = vmatprep.subr.mxu0 0.0
        %1569 = vmatpush1.msra.mxu0 0.0
        %1570 = vmatprep.subr.mxu0 0.0
        %1571 = vmatpush1.msra.mxu0 0.0
        %1572 = vmatprep.subr.mxu0 0.0
        %1573 = vmatpush1.msra.mxu0 0.0
        %1574 = vmatprep.subr.mxu0 0.0
        %1575 = vmatpush1.msra.mxu0 0.0
        %1576 = vmatprep.subr.mxu0 0.0
        %1577 = vmatpush1.msra.mxu0 0.0
        %1578 = vmatprep.subr.mxu0 0.0
        %1579 = vmatpush1.msra.mxu0 0.0
        %1580 = vmatprep.subr.mxu0 0.0
        %1581 = vmatpush1.msra.mxu0 0.0
        %1582 = vmatprep.subr.mxu0 0.0
        %1583 = vmatpush1.msra.mxu0 0.0
        %1584 = vmatprep.subr.mxu0 0.0
        %1585 = vmatpush1.msra.mxu0 0.0
        %1586 = vmatprep.subr.mxu0 0.0
        %1587 = vmatpush1.msra.mxu0 0.0
        %1588 = vmatprep.subr.mxu0 0.0
        %1589 = vmatpush1.msra.mxu0 0.0
        %1590 = vmatprep.subr.mxu0 0.0
        %1591 = vmatpush1.msra.mxu0 0.0
        %1592 = vmatprep.subr.mxu0 0.0
        %1593 = vmatpush1.msra.mxu0 0.0
        %1594 = vmatprep.subr.mxu0 0.0
        %1595 = vmatpush1.msra.mxu0 0.0
        %1596 = vmatprep.subr.mxu0 0.0
        %1597 = vmatpush1.msra.mxu0 0.0
        %1598 = vmatprep.subr.mxu0 0.0
        %1599 = vmatpush1.msra.mxu0 0.0
        %1600 = vmatprep.subr.mxu0 0.0
        %1601 = vmatpush1.msra.mxu0 0.0
        %1602 = vmatprep.subr.mxu0 0.0
        %1603 = vmatpush1.msra.mxu0 0.0
        %1604 = vmatprep.mubr.f32.mxu0 0.0
        %1605 = vmatmul.mubr.f32.gmra.mrb[0].mxu0 %v1538
        %v1606 = vpop.f32.mrb[0].mxu0
        %v1607 = vadd.f32 %v1535, %v1606
        %v1608 = vpop.f32.mrb[0].mxu0
        %1609 = vdwg.mxu0
        %v1610 = vmul.f32 %v1607, 0.5
        %v1611 = vmul.f32 %v1607, 0.044715
        %v1612 = vmul.f32 %v1611, %v1607
        %v1613 = vmul.f32 %v1612, %v1607
        %v1614 = vadd.f32 %v1607, %v1613
        %v1615 = vmul.f32 %v1614, 0.7978846
        %v1616 = vtanh.pop %v1615
        %v1617 = vadd.f32 %v1616, 1.0
        %v1618 = vmul.f32 %v1610, %v1617
        %v1619 = vld [vmem:[%s11] sm:$0xff]
        %v1620 = vld [vmem:[%s11 + $0x8] sm:$0xff]
        %v1621 = vld [vmem:[%s11 + $0x10] sm:$0xff]
        %v1622 = vld [vmem:[%s11 + $0x18] sm:$0xff]
        %v1623 = vld [vmem:[#allocation10] sm:$0x1]
        %v1625 = vlaneseq
        %v1626 = vshrl.u32 %v1625, 7
        %v1627 = vsub.s32 0, %v1626
        %v1628 = vrot.slane %v1623, %v1627
        %1630 = vmatprep.subr.mxu0 0.0
        %1631 = vmatpush1.msra.mxu0 %v1619
        %1632 = vmatprep.subr.mxu0 0.0
        %1633 = vmatpush1.msra.mxu0 %v1620
        %1634 = vmatprep.subr.mxu0 0.0
        %1635 = vmatpush1.msra.mxu0 %v1621
        %1636 = vmatprep.subr.mxu0 0.0
        %1637 = vmatpush1.msra.mxu0 %v1622
        %1638 = vmatprep.subr.mxu0 0.0
        %1639 = vmatpush1.msra.mxu0 0.0
        %1640 = vmatprep.subr.mxu0 0.0
        %1641 = vmatpush1.msra.mxu0 0.0
        %1642 = vmatprep.subr.mxu0 0.0
        %1643 = vmatpush1.msra.mxu0 0.0
        %1644 = vmatprep.subr.mxu0 0.0
        %1645 = vmatpush1.msra.mxu0 0.0
        %1646 = vmatprep.subr.mxu0 0.0
        %1647 = vmatpush1.msra.mxu0 0.0
        %1648 = vmatprep.subr.mxu0 0.0
        %1649 = vmatpush1.msra.mxu0 0.0
        %1650 = vmatprep.subr.mxu0 0.0
        %1651 = vmatpush1.msra.mxu0 0.0
        %1652 = vmatprep.subr.mxu0 0.0
        %1653 = vmatpush1.msra.mxu0 0.0
        %1654 = vmatprep.subr.mxu0 0.0
        %1655 = vmatpush1.msra.mxu0 0.0
        %1656 = vmatprep.subr.mxu0 0.0
        %1657 = vmatpush1.msra.mxu0 0.0
        %1658 = vmatprep.subr.mxu0 0.0
        %1659 = vmatpush1.msra.mxu0 0.0
        %1660 = vmatprep.subr.mxu0 0.0
        %1661 = vmatpush1.msra.mxu0 0.0
        %1662 = vmatprep.subr.mxu0 0.0
        %1663 = vmatpush1.msra.mxu0 0.0
        %1664 = vmatprep.subr.mxu0 0.0
        %1665 = vmatpush1.msra.mxu0 0.0
        %1666 = vmatprep.subr.mxu0 0.0
        %1667 = vmatpush1.msra.mxu0 0.0
        %1668 = vmatprep.subr.mxu0 0.0
        %1669 = vmatpush1.msra.mxu0 0.0
        %1670 = vmatprep.subr.mxu0 0.0
        %1671 = vmatpush1.msra.mxu0 0.0
        %1672 = vmatprep.subr.mxu0 0.0
        %1673 = vmatpush1.msra.mxu0 0.0
        %1674 = vmatprep.subr.mxu0 0.0
        %1675 = vmatpush1.msra.mxu0 0.0
        %1676 = vmatprep.subr.mxu0 0.0
        %1677 = vmatpush1.msra.mxu0 0.0
        %1678 = vmatprep.subr.mxu0 0.0
        %1679 = vmatpush1.msra.mxu0 0.0
        %1680 = vmatprep.subr.mxu0 0.0
        %1681 = vmatpush1.msra.mxu0 0.0
        %1682 = vmatprep.subr.mxu0 0.0
        %1683 = vmatpush1.msra.mxu0 0.0
        %1684 = vmatprep.subr.mxu0 0.0
        %1685 = vmatpush1.msra.mxu0 0.0
        %1686 = vmatprep.subr.mxu0 0.0
        %1687 = vmatpush1.msra.mxu0 0.0
        %1688 = vmatprep.subr.mxu0 0.0
        %1689 = vmatpush1.msra.mxu0 0.0
        %1690 = vmatprep.subr.mxu0 0.0
        %1691 = vmatpush1.msra.mxu0 0.0
        %1692 = vmatprep.subr.mxu0 0.0
        %1693 = vmatpush1.msra.mxu0 0.0
        %1694 = vmatprep.mubr.f32.mxu0 0.0
        %1695 = vmatmul.mubr.f32.gmra.mrb[0].mxu0 %v1538
        %v1696 = vpop.f32.mrb[0].mxu0
        %v1697 = vadd.f32 %v1628, %v1696
        %v1698 = vpop.f32.mrb[0].mxu0
        %1699 = vdwg.mxu0
        %v1700 = vmul.f32 %v1618, %v1697
        %v1701 = vld [vmem:[%s13] sm:$0xff]
        %v1702 = vld [vmem:[%s13 + $0x8] sm:$0xff]
        %v1703 = vld [vmem:[%s13 + $0x10] sm:$0xff]
        %v1704 = vld [vmem:[%s13 + $0x18] sm:$0xff]
        %v1705 = vld [vmem:[%s13 + $0x20] sm:$0xff]
        %v1706 = vld [vmem:[%s13 + $0x28] sm:$0xff]
        %v1707 = vld [vmem:[%s13 + $0x30] sm:$0xff]
        %v1708 = vld [vmem:[%s13 + $0x38] sm:$0xff]
        %v1709 = vld [vmem:[%s13 + $0x40] sm:$0xff]
        %v1710 = vld [vmem:[%s13 + $0x48] sm:$0xff]
        %v1711 = vld [vmem:[%s13 + $0x50] sm:$0xff]
        %v1712 = vld [vmem:[%s13 + $0x58] sm:$0xff]
        %v1713 = vld [vmem:[%s13 + $0x60] sm:$0xff]
        %v1714 = vld [vmem:[%s13 + $0x68] sm:$0xff]
        %v1715 = vld [vmem:[%s13 + $0x70] sm:$0xff]
        %v1716 = vld [vmem:[%s13 + $0x78] sm:$0xff]
        %v1717 = vld [vmem:[#allocation11] sm:$0x1]
        %v1719 = vlaneseq
        %v1720 = vshrl.u32 %v1719, 7
        %v1721 = vsub.s32 0, %v1720
        %v1722 = vrot.slane %v1717, %v1721
        %1724 = vmatprep.subr.mxu0 0.0
        %1725 = vmatpush1.msra.mxu0 %v1701
        %1726 = vmatprep.subr.mxu0 0.0
        %1727 = vmatpush1.msra.mxu0 %v1702
        %1728 = vmatprep.subr.mxu0 0.0
        %1729 = vmatpush1.msra.mxu0 %v1703
        %1730 = vmatprep.subr.mxu0 0.0
        %1731 = vmatpush1.msra.mxu0 %v1704
        %1732 = vmatprep.subr.mxu0 0.0
        %1733 = vmatpush1.msra.mxu0 %v1705
        %1734 = vmatprep.subr.mxu0 0.0
        %1735 = vmatpush1.msra.mxu0 %v1706
        %1736 = vmatprep.subr.mxu0 0.0
        %1737 = vmatpush1.msra.mxu0 %v1707
        %1738 = vmatprep.subr.mxu0 0.0
        %1739 = vmatpush1.msra.mxu0 %v1708
        %1740 = vmatprep.subr.mxu0 0.0
        %1741 = vmatpush1.msra.mxu0 %v1709
        %1742 = vmatprep.subr.mxu0 0.0
        %1743 = vmatpush1.msra.mxu0 %v1710
        %1744 = vmatprep.subr.mxu0 0.0
        %1745 = vmatpush1.msra.mxu0 %v1711
        %1746 = vmatprep.subr.mxu0 0.0
        %1747 = vmatpush1.msra.mxu0 %v1712
        %1748 = vmatprep.subr.mxu0 0.0
        %1749 = vmatpush1.msra.mxu0 %v1713
        %1750 = vmatprep.subr.mxu0 0.0
        %1751 = vmatpush1.msra.mxu0 %v1714
        %1752 = vmatprep.subr.mxu0 0.0
        %1753 = vmatpush1.msra.mxu0 %v1715
        %1754 = vmatprep.subr.mxu0 0.0
        %1755 = vmatpush1.msra.mxu0 %v1716
        %1756 = vmatprep.subr.mxu0 0.0
        %1757 = vmatpush1.msra.mxu0 0.0
        %1758 = vmatprep.subr.mxu0 0.0
        %1759 = vmatpush1.msra.mxu0 0.0
        %1760 = vmatprep.subr.mxu0 0.0
        %1761 = vmatpush1.msra.mxu0 0.0
        %1762 = vmatprep.subr.mxu0 0.0
        %1763 = vmatpush1.msra.mxu0 0.0
        %1764 = vmatprep.subr.mxu0 0.0
        %1765 = vmatpush1.msra.mxu0 0.0
        %1766 = vmatprep.subr.mxu0 0.0
        %1767 = vmatpush1.msra.mxu0 0.0
        %1768 = vmatprep.subr.mxu0 0.0
        %1769 = vmatpush1.msra.mxu0 0.0
        %1770 = vmatprep.subr.mxu0 0.0
        %1771 = vmatpush1.msra.mxu0 0.0
        %1772 = vmatprep.subr.mxu0 0.0
        %1773 = vmatpush1.msra.mxu0 0.0
        %1774 = vmatprep.subr.mxu0 0.0
        %1775 = vmatpush1.msra.mxu0 0.0
        %1776 = vmatprep.subr.mxu0 0.0
        %1777 = vmatpush1.msra.mxu0 0.0
        %1778 = vmatprep.subr.mxu0 0.0
        %1779 = vmatpush1.msra.mxu0 0.0
        %1780 = vmatprep.subr.mxu0 0.0
        %1781 = vmatpush1.msra.mxu0 0.0
        %1782 = vmatprep.subr.mxu0 0.0
        %1783 = vmatpush1.msra.mxu0 0.0
        %1784 = vmatprep.subr.mxu0 0.0
        %1785 = vmatpush1.msra.mxu0 0.0
        %1786 = vmatprep.subr.mxu0 0.0
        %1787 = vmatpush1.msra.mxu0 0.0
        %1788 = vmatprep.mubr.f32.mxu0 0.0
        %1789 = vmatmul.mubr.f32.gmra.mrb[0].mxu0 %v1700
        %v1790 = vpop.f32.mrb[0].mxu0
        %v1791 = vadd.f32 %v1722, %v1790
        %v1792 = vpop.f32.mrb[0].mxu0
        %1793 = vdwg.mxu0
        %v1794 = vadd.f32 %v1496, %v1791
        %1795 = vst.msk [vmem:[%s653] sm:$0xff] %vm658, %v1794
        %s1796 = sand.u32 %s429, 1
        %s1797 = scalar_lea.sflag [#allocation4], %s1796
        %s1798 = sand.u32 %s429, 1
        %s1799 = smul.addr %s1798, 8
        %s1800 = scalar_lea.vmem [#allocation13], %s1799
        // Predicated region
        $region117: #{attention_layer_forward.1} parent=91 // pred_check
          %p1801 = pneg %p439
        $region118: #{attention_layer_forward.1} parent=91 // pred_check_branch
          %1803 = sbr.rel (%p1801) target = $region120
        $region119: #{attention_layer_forward.1} parent=91 // pred_region
          %s1805 = ssub.s32 128, 128
          %1806 = vsyncadd %s1797, %s1805
          %s1807 = smul.addr %s38, 128
          %s1808 = scalar_lea.hbm %s18, %s1807
          %s1810 = sshll.u32 %s1800, 4
          %s1811 = int_to_ptr.vmem [resolvable:$true] %s1810
          %1813 = dma.vmem_to_hbm [thread:$0]  %s1811, 128, %s1808, %s1797
        $region120: #{attention_layer_forward.1} parent=91 // pred_fallthru
          _
      $region92: #{attention_layer_forward.1} parent=5 // pred_fallthru
        _
      %p1814 = scmp.le.s32.totalorder 2, %s33
      // Predicated region
      $region121: #{attention_layer_forward.1} parent=5 // pred_check
        %p1815 = pneg %p1814
      $region122: #{attention_layer_forward.1} parent=5 // pred_check_branch
        %1817 = sbr.rel (%p1815) target = $region124
      $region123: #{attention_layer_forward.1} parent=5 // pred_region
        %s1818 = ssub.s32 %s33, 2
        // Predicated region
        $region125: #{attention_layer_forward.1} parent=123 // pred_check
          %p1819 = pneg %p445
        $region126: #{attention_layer_forward.1} parent=123 // pred_check_branch
          %1821 = sbr.rel (%p1819) target = $region128
        $region127: #{attention_layer_forward.1} parent=123 // pred_region
          %s1822 = sand.u32 %s430, 1
          %s1823 = scalar_lea.sflag [#allocation4], %s1822
          %s1824 = sand.u32 %s430, 1
          %s1825 = smul.addr %s1824, 8
          %s1826 = scalar_lea.vmem [#allocation13], %s1825
          %1827 = dma.done %s1823, 128
        $region128: #{attention_layer_forward.1} parent=123 // pred_fallthru
          _
      $region124: #{attention_layer_forward.1} parent=5 // pred_fallthru
        _
    $region6: #{attention_layer_forward.1} parent=1 // loop_footer
      %s37 = sadd.s32 1, %s33
    $region7: #{attention_layer_forward.1} parent=1 // loop_footer_branch
      %32 = sbr.rel target = $region3
    $region8: #{attention_layer_forward.1} parent=1 // loop_exit
      _
    %1828 = vsyncpa [#allocation3], 1
    %s1829 = scalar_lea.sflag [#allocation3], 1
    %1830 = vsyncpa %s1829, 1
    %1831 = vsyncpa [#allocation6], 1
    %1832 = vsyncpa [#allocation9], 1
    %1833 = vsyncpa [#allocation12], 1
    %1834 = vsyncpa [#allocation4], 1
    %s1835 = scalar_lea.sflag [#allocation4], 1
    %1836 = vsyncpa %s1835, 1

</llo_original>
